<compile_context>
chip_gen: v7x
topology: tpu7x:2x2x1
jax: 0.10.0
libtpu: 0.0.40
codegen_flags: <defaults>
</compile_context>

<pallas_src>
import functools
import math

import jax
import jax.numpy as jnp
from jax.experimental import pallas as pl
from jax.experimental.pallas import tpu as pltpu


# ----------------------------- fused kernel --------------------------------


def _build_fused_kernel(block_meta, K, T, M):
    """Whole-network kernel for a fixed (static) block structure.

    Ref order: (x, [w1, w2, (wd)] per block, bias_pack, lin_w, lin_b, out).
    Activations are kept as a flattened (M = Bt*T, C) f32 slab.
    """

    def kernel(*refs):
        x_ref = refs[0]
        bias_ref = refs[-4]                    # (R, C)   f32, packed biases
        linw_ref = refs[-3]                    # (1, C)   f32
        linb_ref = refs[-2]                    # (1,)     f32 in SMEM
        o_ref = refs[-1]                       # (1, M)

        # Time-within-sample index per row (rows are (sample, t) flattened):
        # hoisted once, reused for every causal mask.
        t_idx = jax.lax.broadcasted_iota(jnp.int32, (M, 1), 0) % T
        biases = bias_ref[...]

        def causal_conv(h_f32, w_ref, b_row, d):
            """Causal dilated conv1d = K accumulating dots on roll-shifted,
            iota-masked inputs (no pad / im2col concat)."""
            acc = None
            for k in range(K):
                s = (K - 1 - k) * d            # static shift for this tap
                if s >= T:                     # tap only sees left zero-pad
                    continue
                if s == 0:
                    xk = h_f32
                else:
                    xk = pltpu.roll(h_f32, s, 0)            # row t <- t - s
                    xk = jnp.where(t_idx >= s, xk, 0.0)     # causal zero-pad
                part = jnp.dot(xk.astype(jnp.bfloat16), w_ref[k],
                               preferred_element_type=jnp.float32)
                acc = part if acc is None else acc + part
            return acc + b_row

        h = x_ref[...].astype(jnp.float32)     # (M, Cin0)
        idx = 1
        for meta in block_meta:
            d = meta["dilation"]
            r = meta["bias_row"]
            w1_ref, w2_ref = refs[idx], refs[idx + 1]
            idx += 2
            h1 = jnp.maximum(causal_conv(h, w1_ref, biases[r:r + 1], d), 0.0)
            h2 = jnp.maximum(causal_conv(h1, w2_ref, biases[r + 1:r + 2], d),
                             0.0)
            if meta["has_ds"]:
                wd_ref = refs[idx]
                idx += 1
                res = (jnp.dot(h.astype(jnp.bfloat16), wd_ref[...],
                               preferred_element_type=jnp.float32)
                       + biases[r + 2:r + 3])
            else:
                res = h
            h = jnp.maximum(h2 + res, 0.0)     # f32 elementwise throughout

        # Head: (1,C)·(M,C)^T -> (1,M) lane-dense row; sigmoid on the EUP
        # (exp + approx reciprocal), clamped so the output stays <= 1.
        logits = jax.lax.dot_general(
            linw_ref[...], h, dimension_numbers=(((1,), (1,)), ((), ())),
            preferred_element_type=jnp.float32) + linb_ref[0]
        prob = pl.reciprocal(1.0 + jnp.exp(-logits), approx=True)
        o_ref[...] = jnp.minimum(prob, 1.0).astype(o_ref.dtype)

    return kernel


# ----------------------------- wrapper --------------------------------------


def discriminator_forward(params, x, channel_last=True, batch_tile=None):
    """x: (B, T, input_size) if channel_last else (B, input_size, T)."""
    if not channel_last:
        x = jnp.transpose(x, (0, 2, 1))
    x = x.astype(jnp.float32)
    B, T, cin0 = x.shape
    blocks = params["blocks"]
    K = blocks[0]["w1"].shape[0]
    C = params["lin_w"].shape[0]

    # Batch fold: Bt samples per grid step so the MXU sees >= ~256 rows, but
    # keep >= 2 grid steps when B allows (v7x megacore via "parallel").
    if batch_tile is None:
        bt = max(1, min(B, pl.cdiv(256, T)))
        if B > 2 and pl.cdiv(B, bt) < 2:
            bt = pl.cdiv(B, 2)
    else:
        bt = max(1, min(B, batch_tile))
    nb = pl.cdiv(B, bt)
    Bp = nb * bt
    if Bp != B:
        x = jnp.pad(x, ((0, Bp - B), (0, 0), (0, 0)))
    M = bt * T
    xg = x.reshape(nb, M, cin0)

    inputs = [xg]
    in_specs = [pl.BlockSpec((None, M, cin0), lambda g: (g, 0, 0))]

    def _resident(arr):
        """Full-array, VMEM-resident operand (constant block index)."""
        inputs.append(arr)
        zeros = (0,) * arr.ndim
        in_specs.append(pl.BlockSpec(arr.shape, lambda g, _z=zeros: _z))

    block_meta = []
    bias_rows = []
    for i, blk in enumerate(blocks):
        has_ds = "wd" in blk
        _resident(blk["w1"].astype(jnp.bfloat16))          # (K, cin, C)
        _resident(blk["w2"].astype(jnp.bfloat16))          # (K, C,   C)
        if has_ds:
            _resident(blk["wd"][0].astype(jnp.bfloat16))   # (cin, C)
        block_meta.append({"dilation": 2 ** i, "has_ds": has_ds,
                           "bias_row": len(bias_rows)})
        bias_rows.append(blk["b1"].reshape(1, -1))
        bias_rows.append(blk["b2"].reshape(1, -1))
        if has_ds:
            bias_rows.append(blk["bd"].reshape(1, -1))

    # All tiny per-layer biases packed into ONE VMEM operand.
    _resident(jnp.concatenate(bias_rows, axis=0).astype(jnp.float32))
    _resident(params["lin_w"].reshape(1, C).astype(jnp.float32))
    # lin_b rides in SMEM as a single scalar.
    inputs.append(params["lin_b"].reshape((1,)).astype(jnp.float32))
    in_specs.append(pl.BlockSpec(memory_space=pltpu.MemorySpace.SMEM))

    kernel = _build_fused_kernel(block_meta, K, T, M)
    out = pl.pallas_call(
        kernel,
        out_shape=jax.ShapeDtypeStruct((nb, 1, M), jnp.float32),
        grid=(nb,),
        in_specs=in_specs,
        out_specs=pl.BlockSpec((None, 1, M), lambda g: (g, 0, 0)),
        compiler_params=pltpu.CompilerParams(
            dimension_semantics=("parallel",)),
    )(*inputs)
    return out.reshape(Bp, T, 1)[:B]


# ----------------------------- pure-JAX reference ---------------------------


def _reference_forward(params, x):
    def conv(z, w, b, d):
        Kk = w.shape[0]
        Tt = z.shape[1]
        P = (Kk - 1) * d
        zp = jnp.pad(z, ((0, 0), (P, 0), (0, 0)))
        acc = jnp.zeros(z.shape[:2] + (w.shape[2],), jnp.float32)
        for k in range(Kk):
            acc = acc + jnp.einsum("btc,co->bto",
                                   zp[:, k * d:k * d + Tt, :], w[k])
        return acc + b

    h = x
    for i, blk in enumerate(params["blocks"]):
        d = 2 ** i
        h1 = jax.nn.relu(conv(h, blk["w1"], blk["b1"], d))
        h2 = jax.nn.relu(conv(h1, blk["w2"], blk["b2"], d))
        res = conv(h, blk["wd"], blk["bd"], 1) if "wd" in blk else h
        h = jax.nn.relu(h2 + res)
    y = jnp.einsum("btc,co->bto", h, params["lin_w"]) + params["lin_b"]
    return jax.nn.sigmoid(y)


# ----------------------------- params --------------------------------------


def _xavier_uniform(key, shape, fan_in, fan_out, gain):
    bound = gain * math.sqrt(6.0 / (fan_in + fan_out))
    return jax.random.uniform(key, shape, jnp.float32, -bound, bound)


def _conv_bias(key, cout, fan_in):
    b = 1.0 / math.sqrt(fan_in)
    return jax.random.uniform(key, (1, cout), jnp.float32, -b, b)


def init_params(key, input_size, n_layers, n_channel, kernel_size):
    gain = math.sqrt(2.0)
    blocks = []
    cnt = 0

    def nk():
        nonlocal cnt
        cnt += 1
        return jax.random.fold_in(key, cnt)

    for i in range(n_layers):
        cin = input_size if i == 0 else n_channel
        cout = n_channel
        blk = {}
        blk["w1"] = _xavier_uniform(nk(), (kernel_size, cin, cout),
                                    cin * kernel_size, cout * kernel_size, gain)
        blk["b1"] = _conv_bias(nk(), cout, cin * kernel_size)
        blk["w2"] = _xavier_uniform(nk(), (kernel_size, cout, cout),
                                    cout * kernel_size, cout * kernel_size, gain)
        blk["b2"] = _conv_bias(nk(), cout, cout * kernel_size)
        if cin != cout:
            blk["wd"] = _xavier_uniform(nk(), (1, cin, cout), cin, cout, gain)
            blk["bd"] = _conv_bias(nk(), cout, cin)
        blocks.append(blk)

    lin_w = 0.01 * jax.random.normal(nk(), (n_channel, 1), jnp.float32)
    lb = 1.0 / math.sqrt(n_channel)
    lin_b = jax.random.uniform(nk(), (1, 1), jnp.float32, -lb, lb)
    return {"blocks": blocks, "lin_w": lin_w, "lin_b": lin_b}


# ----------------------------- main -----------------------------------------

if __name__ == "__main__":
    B, T, input_size = 2, 16, 4
    n_layers, n_channel, kernel_size = 2, 32, 3

    key = jax.random.PRNGKey(0)
    params = init_params(key, input_size, n_layers, n_channel, kernel_size)
    x = jax.random.normal(jax.random.fold_in(key, 12345),
                          (B, T, input_size), jnp.float32)

    fwd = jax.jit(functools.partial(discriminator_forward, channel_last=True))
    y = jax.block_until_ready(fwd(params, x))

    assert y.shape == (B, T, 1), y.shape
    assert bool(jnp.all(jnp.isfinite(y)))
    assert bool(jnp.all((y >= 0.0) & (y <= 1.0)))

    y_ref = _reference_forward(params, x)
    err = float(jnp.max(jnp.abs(y - y_ref)))
    assert err < 2e-2, f"max abs err vs reference: {err}"

    print("KERNEL_OK")
</pallas_src>

<mosaic_0001>
module attributes {stable_mosaic.version = 11 : i64} {
  func.func @kernel(%arg0: i32, %arg1: memref<1x32x4xf32, #tpu.memory_space<vmem>>, %arg2: memref<3x4x32xbf16, #tpu.memory_space<vmem>>, %arg3: memref<3x32x32xbf16, #tpu.memory_space<vmem>>, %arg4: memref<4x32xbf16, #tpu.memory_space<vmem>>, %arg5: memref<3x32x32xbf16, #tpu.memory_space<vmem>>, %arg6: memref<3x32x32xbf16, #tpu.memory_space<vmem>>, %arg7: memref<5x32xf32, #tpu.memory_space<vmem>>, %arg8: memref<1x32xf32, #tpu.memory_space<vmem>>, %arg9: memref<1xf32, #tpu.memory_space<smem>>, %arg10: memref<1x1x32xf32, #tpu.memory_space<vmem>>) attributes {dimension_semantics = [#tpu.dimension_semantics<parallel>], iteration_bounds = array<i64: 1>, scalar_prefetch = 0 : i64, scratch_operands = 0 : i64, tpu.core_type = #tpu.core_type<tc>, window_params = [{transform_indices = @transform_0, window_bounds = array<i64: 1, 32, 4>}, {pipeline_mode = #tpu.pipeline_mode<synchronous>, transform_indices = @transform_1, window_bounds = array<i64: 3, 4, 32>}, {pipeline_mode = #tpu.pipeline_mode<synchronous>, transform_indices = @transform_2, window_bounds = array<i64: 3, 32, 32>}, {pipeline_mode = #tpu.pipeline_mode<synchronous>, transform_indices = @transform_3, window_bounds = array<i64: 4, 32>}, {pipeline_mode = #tpu.pipeline_mode<synchronous>, transform_indices = @transform_4, window_bounds = array<i64: 3, 32, 32>}, {pipeline_mode = #tpu.pipeline_mode<synchronous>, transform_indices = @transform_5, window_bounds = array<i64: 3, 32, 32>}, {pipeline_mode = #tpu.pipeline_mode<synchronous>, transform_indices = @transform_6, window_bounds = array<i64: 5, 32>}, {pipeline_mode = #tpu.pipeline_mode<synchronous>, transform_indices = @transform_7, window_bounds = array<i64: 1, 32>}, {transform_indices = @transform_8, window_bounds = array<i64: 1>}, {transform_indices = @transform_9, window_bounds = array<i64: 1, 1, 32>}]} {
    %0 = tpu.iota {dimensions = array<i32: 0>} : vector<32x1xi32>
    %c16_i32 = arith.constant 16 : i32
    %c0_i32 = arith.constant 0 : i32
    %1 = arith.cmpi eq, %c16_i32, %c0_i32 : i32
    %c1_i32 = arith.constant 1 : i32
    %2 = arith.select %1, %c1_i32, %c16_i32 : i32
    %3 = vector.broadcast %2 : i32 to vector<32x1xi32>
    %4 = arith.remsi %0, %3 : vector<32x1xi32>
    %c0_i32_0 = arith.constant 0 : i32
    %5 = vector.broadcast %c0_i32_0 : i32 to vector<32x1xi32>
    %6 = arith.cmpi ne, %4, %5 : vector<32x1xi32>
    %c0_i32_1 = arith.constant 0 : i32
    %7 = vector.broadcast %c0_i32_1 : i32 to vector<32x1xi32>
    %8 = arith.cmpi slt, %4, %7 : vector<32x1xi32>
    %c0_i32_2 = arith.constant 0 : i32
    %9 = arith.cmpi slt, %2, %c0_i32_2 : i32
    %10 = vector.broadcast %9 : i1 to vector<32x1xi1>
    %11 = vector.broadcast %10 : vector<32x1xi1> to vector<32x1xi1>
    %12 = arith.xori %8, %11 : vector<32x1xi1>
    %13 = arith.andi %12, %6 : vector<32x1xi1>
    %14 = vector.broadcast %2 : i32 to vector<32x1xi32>
    %15 = arith.addi %4, %14 : vector<32x1xi32>
    %16 = arith.select %13, %15, %4 : vector<32x1xi1>, vector<32x1xi32>
    %c0 = arith.constant 0 : index
    %c0_3 = arith.constant 0 : index
    %17 = vector.load %arg7[%c0, %c0_3] : memref<5x32xf32, #tpu.memory_space<vmem>>, vector<5x32xf32>
    %c0_4 = arith.constant 0 : index
    %c0_5 = arith.constant 0 : index
    %c0_6 = arith.constant 0 : index
    %18 = vector.load %arg1[%c0_4, %c0_5, %c0_6] : memref<1x32x4xf32, #tpu.memory_space<vmem>>, vector<1x32x4xf32>
    %19 = vector.shape_cast %18 : vector<1x32x4xf32> to vector<32x4xf32>
    %20 = vector.extract_strided_slice %17 {offsets = [0, 0], sizes = [1, 32], strides = [1, 1]} : vector<5x32xf32> to vector<1x32xf32>
    %c2_i32 = arith.constant 2 : i32
    %21 = tpu.dynamic_rotate %19 by %c2_i32 dim 0 : vector<32x4xf32>, i32 -> vector<32x4xf32>
    %c2_i32_7 = arith.constant 2 : i32
    %22 = vector.broadcast %c2_i32_7 : i32 to vector<32x1xi32>
    %23 = arith.cmpi sge, %16, %22 : vector<32x1xi32>
    %cst = arith.constant 0.000000e+00 : f32
    %24 = vector.shape_cast %23 : vector<32x1xi1> to vector<32x1xi1>
    %25 = vector.broadcast %24 : vector<32x1xi1> to vector<32x4xi1>
    %26 = vector.broadcast %cst : f32 to vector<32x4xf32>
    %27 = arith.select %25, %21, %26 : vector<32x4xi1>, vector<32x4xf32>
    %28 = arith.truncf %27 : vector<32x4xf32> to vector<32x4xbf16>
    %c0_8 = arith.constant 0 : index
    %c0_9 = arith.constant 0 : index
    %c0_10 = arith.constant 0 : index
    %29 = vector.load %arg2[%c0_8, %c0_9, %c0_10] : memref<3x4x32xbf16, #tpu.memory_space<vmem>>, vector<1x4x32xbf16>
    %30 = vector.shape_cast %29 : vector<1x4x32xbf16> to vector<4x32xbf16>
    %cst_11 = arith.constant dense<0.000000e+00> : vector<32x32xf32>
    %31 = tpu.matmul %28, %30, %cst_11 {dimension_numbers = #tpu.dot_dimension_numbers<[1], [0], [0], [1], [0, 0, 1, 1], [], []>} : vector<32x4xbf16>, vector<4x32xbf16>, vector<32x32xf32> -> vector<32x32xf32>
    %c1_i32_12 = arith.constant 1 : i32
    %32 = tpu.dynamic_rotate %19 by %c1_i32_12 dim 0 : vector<32x4xf32>, i32 -> vector<32x4xf32>
    %c1_i32_13 = arith.constant 1 : i32
    %33 = vector.broadcast %c1_i32_13 : i32 to vector<32x1xi32>
    %34 = arith.cmpi sge, %16, %33 : vector<32x1xi32>
    %cst_14 = arith.constant 0.000000e+00 : f32
    %35 = vector.shape_cast %34 : vector<32x1xi1> to vector<32x1xi1>
    %36 = vector.broadcast %35 : vector<32x1xi1> to vector<32x4xi1>
    %37 = vector.broadcast %cst_14 : f32 to vector<32x4xf32>
    %38 = arith.select %36, %32, %37 : vector<32x4xi1>, vector<32x4xf32>
    %39 = arith.truncf %38 : vector<32x4xf32> to vector<32x4xbf16>
    %c1 = arith.constant 1 : index
    %c0_15 = arith.constant 0 : index
    %c0_16 = arith.constant 0 : index
    %40 = vector.load %arg2[%c1, %c0_15, %c0_16] : memref<3x4x32xbf16, #tpu.memory_space<vmem>>, vector<1x4x32xbf16>
    %41 = vector.shape_cast %40 : vector<1x4x32xbf16> to vector<4x32xbf16>
    %cst_17 = arith.constant dense<0.000000e+00> : vector<32x32xf32>
    %42 = tpu.matmul %39, %41, %cst_17 {dimension_numbers = #tpu.dot_dimension_numbers<[1], [0], [0], [1], [0, 0, 1, 1], [], []>} : vector<32x4xbf16>, vector<4x32xbf16>, vector<32x32xf32> -> vector<32x32xf32>
    %43 = arith.addf %31, %42 : vector<32x32xf32>
    %44 = arith.truncf %19 : vector<32x4xf32> to vector<32x4xbf16>
    %c2 = arith.constant 2 : index
    %c0_18 = arith.constant 0 : index
    %c0_19 = arith.constant 0 : index
    %45 = vector.load %arg2[%c2, %c0_18, %c0_19] : memref<3x4x32xbf16, #tpu.memory_space<vmem>>, vector<1x4x32xbf16>
    %46 = vector.shape_cast %45 : vector<1x4x32xbf16> to vector<4x32xbf16>
    %cst_20 = arith.constant dense<0.000000e+00> : vector<32x32xf32>
    %47 = tpu.matmul %44, %46, %cst_20 {dimension_numbers = #tpu.dot_dimension_numbers<[1], [0], [0], [1], [0, 0, 1, 1], [], []>} : vector<32x4xbf16>, vector<4x32xbf16>, vector<32x32xf32> -> vector<32x32xf32>
    %48 = arith.addf %43, %47 : vector<32x32xf32>
    %49 = vector.broadcast %20 : vector<1x32xf32> to vector<32x32xf32>
    %50 = arith.addf %48, %49 : vector<32x32xf32>
    %cst_21 = arith.constant 0.000000e+00 : f32
    %51 = vector.broadcast %cst_21 : f32 to vector<32x32xf32>
    %52 = arith.maximumf %50, %51 : vector<32x32xf32>
    %53 = vector.extract_strided_slice %17 {offsets = [1, 0], sizes = [1, 32], strides = [1, 1]} : vector<5x32xf32> to vector<1x32xf32>
    %c2_i32_22 = arith.constant 2 : i32
    %54 = tpu.dynamic_rotate %52 by %c2_i32_22 dim 0 : vector<32x32xf32>, i32 -> vector<32x32xf32>
    %c2_i32_23 = arith.constant 2 : i32
    %55 = vector.broadcast %c2_i32_23 : i32 to vector<32x1xi32>
    %56 = arith.cmpi sge, %16, %55 : vector<32x1xi32>
    %cst_24 = arith.constant 0.000000e+00 : f32
    %57 = vector.shape_cast %56 : vector<32x1xi1> to vector<32x1xi1>
    %58 = vector.broadcast %57 : vector<32x1xi1> to vector<32x32xi1>
    %59 = vector.broadcast %cst_24 : f32 to vector<32x32xf32>
    %60 = arith.select %58, %54, %59 : vector<32x32xi1>, vector<32x32xf32>
    %61 = arith.truncf %60 : vector<32x32xf32> to vector<32x32xbf16>
    %c0_25 = arith.constant 0 : index
    %c0_26 = arith.constant 0 : index
    %c0_27 = arith.constant 0 : index
    %62 = vector.load %arg3[%c0_25, %c0_26, %c0_27] : memref<3x32x32xbf16, #tpu.memory_space<vmem>>, vector<1x32x32xbf16>
    %63 = vector.shape_cast %62 : vector<1x32x32xbf16> to vector<32x32xbf16>
    %cst_28 = arith.constant dense<0.000000e+00> : vector<32x32xf32>
    %64 = tpu.matmul %61, %63, %cst_28 {dimension_numbers = #tpu.dot_dimension_numbers<[1], [0], [0], [1], [0, 0, 1, 1], [], []>} : vector<32x32xbf16>, vector<32x32xbf16>, vector<32x32xf32> -> vector<32x32xf32>
    %c1_i32_29 = arith.constant 1 : i32
    %65 = tpu.dynamic_rotate %52 by %c1_i32_29 dim 0 : vector<32x32xf32>, i32 -> vector<32x32xf32>
    %c1_i32_30 = arith.constant 1 : i32
    %66 = vector.broadcast %c1_i32_30 : i32 to vector<32x1xi32>
    %67 = arith.cmpi sge, %16, %66 : vector<32x1xi32>
    %cst_31 = arith.constant 0.000000e+00 : f32
    %68 = vector.shape_cast %67 : vector<32x1xi1> to vector<32x1xi1>
    %69 = vector.broadcast %68 : vector<32x1xi1> to vector<32x32xi1>
    %70 = vector.broadcast %cst_31 : f32 to vector<32x32xf32>
    %71 = arith.select %69, %65, %70 : vector<32x32xi1>, vector<32x32xf32>
    %72 = arith.truncf %71 : vector<32x32xf32> to vector<32x32xbf16>
    %c1_32 = arith.constant 1 : index
    %c0_33 = arith.constant 0 : index
    %c0_34 = arith.constant 0 : index
    %73 = vector.load %arg3[%c1_32, %c0_33, %c0_34] : memref<3x32x32xbf16, #tpu.memory_space<vmem>>, vector<1x32x32xbf16>
    %74 = vector.shape_cast %73 : vector<1x32x32xbf16> to vector<32x32xbf16>
    %cst_35 = arith.constant dense<0.000000e+00> : vector<32x32xf32>
    %75 = tpu.matmul %72, %74, %cst_35 {dimension_numbers = #tpu.dot_dimension_numbers<[1], [0], [0], [1], [0, 0, 1, 1], [], []>} : vector<32x32xbf16>, vector<32x32xbf16>, vector<32x32xf32> -> vector<32x32xf32>
    %76 = arith.addf %64, %75 : vector<32x32xf32>
    %77 = arith.truncf %52 : vector<32x32xf32> to vector<32x32xbf16>
    %c2_36 = arith.constant 2 : index
    %c0_37 = arith.constant 0 : index
    %c0_38 = arith.constant 0 : index
    %78 = vector.load %arg3[%c2_36, %c0_37, %c0_38] : memref<3x32x32xbf16, #tpu.memory_space<vmem>>, vector<1x32x32xbf16>
    %79 = vector.shape_cast %78 : vector<1x32x32xbf16> to vector<32x32xbf16>
    %cst_39 = arith.constant dense<0.000000e+00> : vector<32x32xf32>
    %80 = tpu.matmul %77, %79, %cst_39 {dimension_numbers = #tpu.dot_dimension_numbers<[1], [0], [0], [1], [0, 0, 1, 1], [], []>} : vector<32x32xbf16>, vector<32x32xbf16>, vector<32x32xf32> -> vector<32x32xf32>
    %81 = arith.addf %76, %80 : vector<32x32xf32>
    %82 = vector.broadcast %53 : vector<1x32xf32> to vector<32x32xf32>
    %83 = arith.addf %81, %82 : vector<32x32xf32>
    %cst_40 = arith.constant 0.000000e+00 : f32
    %84 = vector.broadcast %cst_40 : f32 to vector<32x32xf32>
    %85 = arith.maximumf %83, %84 : vector<32x32xf32>
    %86 = arith.truncf %19 : vector<32x4xf32> to vector<32x4xbf16>
    %c0_41 = arith.constant 0 : index
    %c0_42 = arith.constant 0 : index
    %87 = vector.load %arg4[%c0_41, %c0_42] : memref<4x32xbf16, #tpu.memory_space<vmem>>, vector<4x32xbf16>
    %cst_43 = arith.constant dense<0.000000e+00> : vector<32x32xf32>
    %88 = tpu.matmul %86, %87, %cst_43 {dimension_numbers = #tpu.dot_dimension_numbers<[1], [0], [0], [1], [0, 0, 1, 1], [], []>} : vector<32x4xbf16>, vector<4x32xbf16>, vector<32x32xf32> -> vector<32x32xf32>
    %89 = vector.extract_strided_slice %17 {offsets = [2, 0], sizes = [1, 32], strides = [1, 1]} : vector<5x32xf32> to vector<1x32xf32>
    %90 = vector.broadcast %89 : vector<1x32xf32> to vector<32x32xf32>
    %91 = arith.addf %88, %90 : vector<32x32xf32>
    %92 = arith.addf %85, %91 : vector<32x32xf32>
    %cst_44 = arith.constant 0.000000e+00 : f32
    %93 = vector.broadcast %cst_44 : f32 to vector<32x32xf32>
    %94 = arith.maximumf %92, %93 : vector<32x32xf32>
    %95 = vector.extract_strided_slice %17 {offsets = [3, 0], sizes = [1, 32], strides = [1, 1]} : vector<5x32xf32> to vector<1x32xf32>
    %c4_i32 = arith.constant 4 : i32
    %96 = tpu.dynamic_rotate %94 by %c4_i32 dim 0 : vector<32x32xf32>, i32 -> vector<32x32xf32>
    %c4_i32_45 = arith.constant 4 : i32
    %97 = vector.broadcast %c4_i32_45 : i32 to vector<32x1xi32>
    %98 = arith.cmpi sge, %16, %97 : vector<32x1xi32>
    %cst_46 = arith.constant 0.000000e+00 : f32
    %99 = vector.shape_cast %98 : vector<32x1xi1> to vector<32x1xi1>
    %100 = vector.broadcast %99 : vector<32x1xi1> to vector<32x32xi1>
    %101 = vector.broadcast %cst_46 : f32 to vector<32x32xf32>
    %102 = arith.select %100, %96, %101 : vector<32x32xi1>, vector<32x32xf32>
    %103 = arith.truncf %102 : vector<32x32xf32> to vector<32x32xbf16>
    %c0_47 = arith.constant 0 : index
    %c0_48 = arith.constant 0 : index
    %c0_49 = arith.constant 0 : index
    %104 = vector.load %arg5[%c0_47, %c0_48, %c0_49] : memref<3x32x32xbf16, #tpu.memory_space<vmem>>, vector<1x32x32xbf16>
    %105 = vector.shape_cast %104 : vector<1x32x32xbf16> to vector<32x32xbf16>
    %cst_50 = arith.constant dense<0.000000e+00> : vector<32x32xf32>
    %106 = tpu.matmul %103, %105, %cst_50 {dimension_numbers = #tpu.dot_dimension_numbers<[1], [0], [0], [1], [0, 0, 1, 1], [], []>} : vector<32x32xbf16>, vector<32x32xbf16>, vector<32x32xf32> -> vector<32x32xf32>
    %c2_i32_51 = arith.constant 2 : i32
    %107 = tpu.dynamic_rotate %94 by %c2_i32_51 dim 0 : vector<32x32xf32>, i32 -> vector<32x32xf32>
    %c2_i32_52 = arith.constant 2 : i32
    %108 = vector.broadcast %c2_i32_52 : i32 to vector<32x1xi32>
    %109 = arith.cmpi sge, %16, %108 : vector<32x1xi32>
    %cst_53 = arith.constant 0.000000e+00 : f32
    %110 = vector.shape_cast %109 : vector<32x1xi1> to vector<32x1xi1>
    %111 = vector.broadcast %110 : vector<32x1xi1> to vector<32x32xi1>
    %112 = vector.broadcast %cst_53 : f32 to vector<32x32xf32>
    %113 = arith.select %111, %107, %112 : vector<32x32xi1>, vector<32x32xf32>
    %114 = arith.truncf %113 : vector<32x32xf32> to vector<32x32xbf16>
    %c1_54 = arith.constant 1 : index
    %c0_55 = arith.constant 0 : index
    %c0_56 = arith.constant 0 : index
    %115 = vector.load %arg5[%c1_54, %c0_55, %c0_56] : memref<3x32x32xbf16, #tpu.memory_space<vmem>>, vector<1x32x32xbf16>
    %116 = vector.shape_cast %115 : vector<1x32x32xbf16> to vector<32x32xbf16>
    %cst_57 = arith.constant dense<0.000000e+00> : vector<32x32xf32>
    %117 = tpu.matmul %114, %116, %cst_57 {dimension_numbers = #tpu.dot_dimension_numbers<[1], [0], [0], [1], [0, 0, 1, 1], [], []>} : vector<32x32xbf16>, vector<32x32xbf16>, vector<32x32xf32> -> vector<32x32xf32>
    %118 = arith.addf %106, %117 : vector<32x32xf32>
    %119 = arith.truncf %94 : vector<32x32xf32> to vector<32x32xbf16>
    %c2_58 = arith.constant 2 : index
    %c0_59 = arith.constant 0 : index
    %c0_60 = arith.constant 0 : index
    %120 = vector.load %arg5[%c2_58, %c0_59, %c0_60] : memref<3x32x32xbf16, #tpu.memory_space<vmem>>, vector<1x32x32xbf16>
    %121 = vector.shape_cast %120 : vector<1x32x32xbf16> to vector<32x32xbf16>
    %cst_61 = arith.constant dense<0.000000e+00> : vector<32x32xf32>
    %122 = tpu.matmul %119, %121, %cst_61 {dimension_numbers = #tpu.dot_dimension_numbers<[1], [0], [0], [1], [0, 0, 1, 1], [], []>} : vector<32x32xbf16>, vector<32x32xbf16>, vector<32x32xf32> -> vector<32x32xf32>
    %123 = arith.addf %118, %122 : vector<32x32xf32>
    %124 = vector.broadcast %95 : vector<1x32xf32> to vector<32x32xf32>
    %125 = arith.addf %123, %124 : vector<32x32xf32>
    %cst_62 = arith.constant 0.000000e+00 : f32
    %126 = vector.broadcast %cst_62 : f32 to vector<32x32xf32>
    %127 = arith.maximumf %125, %126 : vector<32x32xf32>
    %128 = vector.extract_strided_slice %17 {offsets = [4, 0], sizes = [1, 32], strides = [1, 1]} : vector<5x32xf32> to vector<1x32xf32>
    %c4_i32_63 = arith.constant 4 : i32
    %129 = tpu.dynamic_rotate %127 by %c4_i32_63 dim 0 : vector<32x32xf32>, i32 -> vector<32x32xf32>
    %c4_i32_64 = arith.constant 4 : i32
    %130 = vector.broadcast %c4_i32_64 : i32 to vector<32x1xi32>
    %131 = arith.cmpi sge, %16, %130 : vector<32x1xi32>
    %cst_65 = arith.constant 0.000000e+00 : f32
    %132 = vector.shape_cast %131 : vector<32x1xi1> to vector<32x1xi1>
    %133 = vector.broadcast %132 : vector<32x1xi1> to vector<32x32xi1>
    %134 = vector.broadcast %cst_65 : f32 to vector<32x32xf32>
    %135 = arith.select %133, %129, %134 : vector<32x32xi1>, vector<32x32xf32>
    %136 = arith.truncf %135 : vector<32x32xf32> to vector<32x32xbf16>
    %c0_66 = arith.constant 0 : index
    %c0_67 = arith.constant 0 : index
    %c0_68 = arith.constant 0 : index
    %137 = vector.load %arg6[%c0_66, %c0_67, %c0_68] : memref<3x32x32xbf16, #tpu.memory_space<vmem>>, vector<1x32x32xbf16>
    %138 = vector.shape_cast %137 : vector<1x32x32xbf16> to vector<32x32xbf16>
    %cst_69 = arith.constant dense<0.000000e+00> : vector<32x32xf32>
    %139 = tpu.matmul %136, %138, %cst_69 {dimension_numbers = #tpu.dot_dimension_numbers<[1], [0], [0], [1], [0, 0, 1, 1], [], []>} : vector<32x32xbf16>, vector<32x32xbf16>, vector<32x32xf32> -> vector<32x32xf32>
    %c2_i32_70 = arith.constant 2 : i32
    %140 = tpu.dynamic_rotate %127 by %c2_i32_70 dim 0 : vector<32x32xf32>, i32 -> vector<32x32xf32>
    %c2_i32_71 = arith.constant 2 : i32
    %141 = vector.broadcast %c2_i32_71 : i32 to vector<32x1xi32>
    %142 = arith.cmpi sge, %16, %141 : vector<32x1xi32>
    %cst_72 = arith.constant 0.000000e+00 : f32
    %143 = vector.shape_cast %142 : vector<32x1xi1> to vector<32x1xi1>
    %144 = vector.broadcast %143 : vector<32x1xi1> to vector<32x32xi1>
    %145 = vector.broadcast %cst_72 : f32 to vector<32x32xf32>
    %146 = arith.select %144, %140, %145 : vector<32x32xi1>, vector<32x32xf32>
    %147 = arith.truncf %146 : vector<32x32xf32> to vector<32x32xbf16>
    %c1_73 = arith.constant 1 : index
    %c0_74 = arith.constant 0 : index
    %c0_75 = arith.constant 0 : index
    %148 = vector.load %arg6[%c1_73, %c0_74, %c0_75] : memref<3x32x32xbf16, #tpu.memory_space<vmem>>, vector<1x32x32xbf16>
    %149 = vector.shape_cast %148 : vector<1x32x32xbf16> to vector<32x32xbf16>
    %cst_76 = arith.constant dense<0.000000e+00> : vector<32x32xf32>
    %150 = tpu.matmul %147, %149, %cst_76 {dimension_numbers = #tpu.dot_dimension_numbers<[1], [0], [0], [1], [0, 0, 1, 1], [], []>} : vector<32x32xbf16>, vector<32x32xbf16>, vector<32x32xf32> -> vector<32x32xf32>
    %151 = arith.addf %139, %150 : vector<32x32xf32>
    %152 = arith.truncf %127 : vector<32x32xf32> to vector<32x32xbf16>
    %c2_77 = arith.constant 2 : index
    %c0_78 = arith.constant 0 : index
    %c0_79 = arith.constant 0 : index
    %153 = vector.load %arg6[%c2_77, %c0_78, %c0_79] : memref<3x32x32xbf16, #tpu.memory_space<vmem>>, vector<1x32x32xbf16>
    %154 = vector.shape_cast %153 : vector<1x32x32xbf16> to vector<32x32xbf16>
    %cst_80 = arith.constant dense<0.000000e+00> : vector<32x32xf32>
    %155 = tpu.matmul %152, %154, %cst_80 {dimension_numbers = #tpu.dot_dimension_numbers<[1], [0], [0], [1], [0, 0, 1, 1], [], []>} : vector<32x32xbf16>, vector<32x32xbf16>, vector<32x32xf32> -> vector<32x32xf32>
    %156 = arith.addf %151, %155 : vector<32x32xf32>
    %157 = vector.broadcast %128 : vector<1x32xf32> to vector<32x32xf32>
    %158 = arith.addf %156, %157 : vector<32x32xf32>
    %cst_81 = arith.constant 0.000000e+00 : f32
    %159 = vector.broadcast %cst_81 : f32 to vector<32x32xf32>
    %160 = arith.maximumf %158, %159 : vector<32x32xf32>
    %161 = arith.addf %160, %94 : vector<32x32xf32>
    %cst_82 = arith.constant 0.000000e+00 : f32
    %162 = vector.broadcast %cst_82 : f32 to vector<32x32xf32>
    %163 = arith.maximumf %161, %162 : vector<32x32xf32>
    %c0_83 = arith.constant 0 : index
    %c0_84 = arith.constant 0 : index
    %164 = vector.load %arg8[%c0_83, %c0_84] : memref<1x32xf32, #tpu.memory_space<vmem>>, vector<1x32xf32>
    %cst_85 = arith.constant dense<0.000000e+00> : vector<1x32xf32>
    %165 = tpu.matmul %164, %163, %cst_85 {dimension_numbers = #tpu.dot_dimension_numbers<[1], [1], [0], [0], [0, 0, 1, 0], [], []>} : vector<1x32xf32>, vector<32x32xf32>, vector<1x32xf32> -> vector<1x32xf32>
    %c0_86 = arith.constant 0 : index
    %166 = memref.load %arg9[%c0_86] : memref<1xf32, #tpu.memory_space<smem>>
    %167 = vector.broadcast %166 : f32 to vector<1x32xf32>
    %168 = arith.addf %165, %167 : vector<1x32xf32>
    %cst_87 = arith.constant 0.000000e+00 : f32
    %169 = vector.broadcast %cst_87 : f32 to vector<1x32xf32>
    %170 = arith.subf %169, %168 : vector<1x32xf32>
    %171 = math.exp %170 : vector<1x32xf32>
    %cst_88 = arith.constant 1.000000e+00 : f32
    %172 = vector.broadcast %cst_88 : f32 to vector<1x32xf32>
    %173 = arith.addf %172, %171 : vector<1x32xf32>
    %174 = tpu.reciprocal %173 {approx = true} : vector<1x32xf32> -> vector<1x32xf32>
    %cst_89 = arith.constant 1.000000e+00 : f32
    %175 = vector.broadcast %cst_89 : f32 to vector<1x32xf32>
    %176 = arith.minimumf %174, %175 : vector<1x32xf32>
    %c0_90 = arith.constant 0 : index
    %c0_91 = arith.constant 0 : index
    %c0_92 = arith.constant 0 : index
    %177 = vector.load %arg10[%c0_90, %c0_91, %c0_92] : memref<1x1x32xf32, #tpu.memory_space<vmem>>, vector<1x1x32xf32>
    %178 = vector.shape_cast %177 : vector<1x1x32xf32> to vector<1x32xf32>
    %179 = vector.shape_cast %176 : vector<1x32xf32> to vector<1x1x32xf32>
    tpu.vector_store %arg10[%c0_90, %c0_91, %c0_92], %179 {strides = array<i32>} : memref<1x1x32xf32, #tpu.memory_space<vmem>>, vector<1x1x32xf32>,
    return
  }
  func.func @transform_0(%arg0: i32) -> (i32, i32, i32) {
    %c0_i32 = arith.constant 0 : i32
    %c0_i32_0 = arith.constant 0 : i32
    %c0_i32_1 = arith.constant 0 : i32
    return %arg0, %c0_i32, %c0_i32_0 : i32, i32, i32
  }
  func.func @transform_1(%arg0: i32) -> (i32, i32, i32) {
    %c0_i32 = arith.constant 0 : i32
    %c0_i32_0 = arith.constant 0 : i32
    %c0_i32_1 = arith.constant 0 : i32
    %c0_i32_2 = arith.constant 0 : i32
    return %c0_i32, %c0_i32_0, %c0_i32_1 : i32, i32, i32
  }
  func.func @transform_2(%arg0: i32) -> (i32, i32, i32) {
    %c0_i32 = arith.constant 0 : i32
    %c0_i32_0 = arith.constant 0 : i32
    %c0_i32_1 = arith.constant 0 : i32
    %c0_i32_2 = arith.constant 0 : i32
    return %c0_i32, %c0_i32_0, %c0_i32_1 : i32, i32, i32
  }
  func.func @transform_3(%arg0: i32) -> (i32, i32) {
    %c0_i32 = arith.constant 0 : i32
    %c0_i32_0 = arith.constant 0 : i32
    %c0_i32_1 = arith.constant 0 : i32
    return %c0_i32, %c0_i32_0 : i32, i32
  }
  func.func @transform_4(%arg0: i32) -> (i32, i32, i32) {
    %c0_i32 = arith.constant 0 : i32
    %c0_i32_0 = arith.constant 0 : i32
    %c0_i32_1 = arith.constant 0 : i32
    %c0_i32_2 = arith.constant 0 : i32
    return %c0_i32, %c0_i32_0, %c0_i32_1 : i32, i32, i32
  }
  func.func @transform_5(%arg0: i32) -> (i32, i32, i32) {
    %c0_i32 = arith.constant 0 : i32
    %c0_i32_0 = arith.constant 0 : i32
    %c0_i32_1 = arith.constant 0 : i32
    %c0_i32_2 = arith.constant 0 : i32
    return %c0_i32, %c0_i32_0, %c0_i32_1 : i32, i32, i32
  }
  func.func @transform_6(%arg0: i32) -> (i32, i32) {
    %c0_i32 = arith.constant 0 : i32
    %c0_i32_0 = arith.constant 0 : i32
    %c0_i32_1 = arith.constant 0 : i32
    return %c0_i32, %c0_i32_0 : i32, i32
  }
  func.func @transform_7(%arg0: i32) -> (i32, i32) {
    %c0_i32 = arith.constant 0 : i32
    %c0_i32_0 = arith.constant 0 : i32
    %c0_i32_1 = arith.constant 0 : i32
    return %c0_i32, %c0_i32_0 : i32, i32
  }
  func.func @transform_8(%arg0: i32) -> i32 {
    %c0_i32 = arith.constant 0 : i32
    %c0_i32_0 = arith.constant 0 : i32
    return %c0_i32 : i32
  }
  func.func @transform_9(%arg0: i32) -> (i32, i32, i32) {
    %c0_i32 = arith.constant 0 : i32
    %c0_i32_0 = arith.constant 0 : i32
    %c0_i32_1 = arith.constant 0 : i32
    return %arg0, %c0_i32, %c0_i32_0 : i32, i32, i32
  }
}

</mosaic_0001>

<llo_original>
// kernel: discriminator_forward.1
$region0: #{discriminator_forward.1}
  #allocation0 [shape = 'u32[]', space=smem, size = 0x4, offset = 0x4, fixed_abs, tag = 'smem constant byte address 0x4 - core index']
  #allocation1 [shape = 'u32[144,128]{1,0:T(1,128)}', space=vmem, size = 0x12000, scoped, tag = 'internal scratch']
  #allocation2 [shape = 'f32[1]{0:T(128)S(6)}', space=smem, size = 0x200, scoped, tag = 'scoped memory for discriminator_forward.1']
  %s0 = inlined_call_operand.vmem [shape: f32[1,32,4], index: 0, kind: input, shape index: {}]
  %s1 = inlined_call_operand.vmem [shape: bf16[3,4,32], index: 1, kind: input, shape index: {}]
  %s2 = inlined_call_operand.vmem [shape: bf16[3,32,32], index: 2, kind: input, shape index: {}]
  %s3 = inlined_call_operand.vmem [shape: bf16[4,32], index: 3, kind: input, shape index: {}]
  %s4 = inlined_call_operand.vmem [shape: bf16[3,32,32], index: 4, kind: input, shape index: {}]
  %s5 = inlined_call_operand.vmem [shape: bf16[3,32,32], index: 5, kind: input, shape index: {}]
  %s6 = inlined_call_operand.vmem [shape: f32[5,32], index: 6, kind: input, shape index: {}]
  %s7 = inlined_call_operand.vmem [shape: f32[1,32], index: 7, kind: input, shape index: {}]
  %s8 = inlined_call_operand.<no memory space> [shape: f32[1], index: 8, kind: input, shape index: {}]
  %s9 = inlined_call_operand.vmem [shape: f32[1,1,32], index: 9, kind: output, shape index: {}]
  %s10 = sld [smem:[#allocation0]]
  $region46: #{discriminator_forward.1} parent=0
    _
  %s12 = ssub.s32 1, %s10
  %s13 = scalar_select 0, %s12, %s10
  %14 = sst [smem:[#allocation2]] %s8
  // Predicated region
  $region2: #{discriminator_forward.1} parent=0 // pred_check
    _
  $region3: #{discriminator_forward.1} parent=0 // pred_check_branch
    %16 = sbr.rel (0) target = $region5
  $region4: #{discriminator_forward.1} parent=0 // pred_region
    _
  $region5: #{discriminator_forward.1} parent=0 // pred_fallthru
    _
  // Predicated region
  $region6: #{discriminator_forward.1} parent=0 // pred_check
    _
  $region7: #{discriminator_forward.1} parent=0 // pred_check_branch
    %18 = sbr.rel (0) target = $region9
  $region8: #{discriminator_forward.1} parent=0 // pred_region
    _
  $region9: #{discriminator_forward.1} parent=0 // pred_fallthru
    _
  // Predicated region
  $region10: #{discriminator_forward.1} parent=0 // pred_check
    _
  $region11: #{discriminator_forward.1} parent=0 // pred_check_branch
    %20 = sbr.rel (0) target = $region13
  $region12: #{discriminator_forward.1} parent=0 // pred_region
    _
  $region13: #{discriminator_forward.1} parent=0 // pred_fallthru
    _
  // Predicated region
  $region14: #{discriminator_forward.1} parent=0 // pred_check
    _
  $region15: #{discriminator_forward.1} parent=0 // pred_check_branch
    %22 = sbr.rel (0) target = $region17
  $region16: #{discriminator_forward.1} parent=0 // pred_region
    _
  $region17: #{discriminator_forward.1} parent=0 // pred_fallthru
    _
  // Predicated region
  $region18: #{discriminator_forward.1} parent=0 // pred_check
    _
  $region19: #{discriminator_forward.1} parent=0 // pred_check_branch
    %24 = sbr.rel (0) target = $region21
  $region20: #{discriminator_forward.1} parent=0 // pred_region
    _
  $region21: #{discriminator_forward.1} parent=0 // pred_fallthru
    _
  // Predicated region
  $region22: #{discriminator_forward.1} parent=0 // pred_check
    _
  $region23: #{discriminator_forward.1} parent=0 // pred_check_branch
    %26 = sbr.rel (0) target = $region25
  $region24: #{discriminator_forward.1} parent=0 // pred_region
    _
  $region25: #{discriminator_forward.1} parent=0 // pred_fallthru
    _
  // Predicated region
  $region26: #{discriminator_forward.1} parent=0 // pred_check
    _
  $region27: #{discriminator_forward.1} parent=0 // pred_check_branch
    %28 = sbr.rel (0) target = $region29
  $region28: #{discriminator_forward.1} parent=0 // pred_region
    _
  $region29: #{discriminator_forward.1} parent=0 // pred_fallthru
    _
  // Predicated region
  $region30: #{discriminator_forward.1} parent=0 // pred_check
    _
  $region31: #{discriminator_forward.1} parent=0 // pred_check_branch
    %30 = sbr.rel (0) target = $region33
  $region32: #{discriminator_forward.1} parent=0 // pred_region
    _
  $region33: #{discriminator_forward.1} parent=0 // pred_fallthru
    _
  // Predicated region
  $region34: #{discriminator_forward.1} parent=0 // pred_check
    _
  $region35: #{discriminator_forward.1} parent=0 // pred_check_branch
    %32 = sbr.rel (0) target = $region37
  $region36: #{discriminator_forward.1} parent=0 // pred_region
    _
  $region37: #{discriminator_forward.1} parent=0 // pred_fallthru
    _
  %v34 = vlaneseq
  %v35 = vshrl.u32 %v34, 7
  %v36 = vadd.s32 %v35, 8
  %v37 = vadd.s32 %v35, 16
  %v38 = vadd.s32 %v35, 24
  %vm39 = vcmp.lt.s32.totalorder %v35, 0
  %v40 = vsub.s32 0, %v35
  %v41 = vsel %vm39, %v40, %v35
  %v42 = vshrl.u32 %v41, 4
  %v43 = vand.u32 %v41, 15
  %v44 = vsub.s32 0, %v43
  %v45 = vsel %vm39, %v44, %v43
  %vm46 = vcmp.lt.s32.totalorder %v36, 0
  %v47 = vsub.s32 0, %v36
  %v48 = vsel %vm46, %v47, %v36
  %v49 = vshrl.u32 %v48, 4
  %v50 = vand.u32 %v48, 15
  %v51 = vsub.s32 0, %v50
  %v52 = vsel %vm46, %v51, %v50
  %vm53 = vcmp.lt.s32.totalorder %v37, 0
  %v54 = vsub.s32 0, %v37
  %v55 = vsel %vm53, %v54, %v37
  %v56 = vshrl.u32 %v55, 4
  %v57 = vand.u32 %v55, 15
  %v58 = vsub.s32 0, %v57
  %v59 = vsel %vm53, %v58, %v57
  %vm60 = vcmp.lt.s32.totalorder %v38, 0
  %v61 = vsub.s32 0, %v38
  %v62 = vsel %vm60, %v61, %v38
  %v63 = vshrl.u32 %v62, 4
  %v64 = vand.u32 %v62, 15
  %v65 = vsub.s32 0, %v64
  %v66 = vsel %vm60, %v65, %v64
  %vm67 = vcmp.ne.s32.totalorder %v45, 0
  %vm68 = vcmp.ne.s32.totalorder %v52, 0
  %vm69 = vcmp.ne.s32.totalorder %v59, 0
  %vm70 = vcmp.ne.s32.totalorder %v66, 0
  %vm71 = vcmp.lt.s32.totalorder %v45, 0
  %vm72 = vcmp.lt.s32.totalorder %v52, 0
  %vm73 = vcmp.lt.s32.totalorder %v59, 0
  %vm74 = vcmp.lt.s32.totalorder %v66, 0
  %vm75 = vmand %vm71, %vm67
  %vm76 = vmand %vm72, %vm68
  %vm77 = vmand %vm73, %vm69
  %vm78 = vmand %vm74, %vm70
  %v79 = vadd.s32 %v45, 16
  %v80 = vadd.s32 %v52, 16
  %v81 = vadd.s32 %v59, 16
  %v82 = vadd.s32 %v66, 16
  %v83 = vsel %vm75, %v79, %v45
  %v84 = vsel %vm76, %v80, %v52
  %v85 = vsel %vm77, %v81, %v59
  %v86 = vsel %vm78, %v82, %v66
  %v87 = vld [vmem:[%s6] sm:$0x1f]
  %v88 = vld [vmem:[%s0] sm:$0xff]
  %v89 = vld [vmem:[%s0 + $0x8] sm:$0xff]
  %v90 = vld [vmem:[%s0 + $0x10] sm:$0xff]
  %v91 = vld [vmem:[%s0 + $0x18] sm:$0xff]
  %v92 = vrot.slane %v88, 6
  %v93 = vrot.slane %v89, 6
  %v94 = vrot.slane %v90, 6
  %v95 = vrot.slane %v91, 6
  %vm96 = vcmp.lt.s32.totalorder %v35, 2
  %v97 = vsel %vm96, %v94, %v95
  %v98 = vsel %vm96, %v93, %v94
  %v99 = vsel %vm96, %v92, %v93
  %v100 = vsel %vm96, %v95, %v92
  %vm101 = vcmp.ge.s32.totalorder %v83, 2
  %vm102 = vcmp.ge.s32.totalorder %v84, 2
  %vm103 = vcmp.ge.s32.totalorder %v85, 2
  %vm104 = vcmp.ge.s32.totalorder %v86, 2
  %v105 = vsel %vm101, 1, 0
  %v106 = vsel %vm102, 1, 0
  %v107 = vsel %vm103, 1, 0
  %v108 = vsel %vm104, 1, 0
  %vm109 = vcmp.eq.s32.totalorder %v105, 1
  %vm110 = vcmp.eq.s32.totalorder %v106, 1
  %vm111 = vcmp.eq.s32.totalorder %v107, 1
  %vm112 = vcmp.eq.s32.totalorder %v108, 1
  %v113 = vsel %vm109, %v100, 0.0
  %v114 = vsel %vm110, %v99, 0.0
  %v115 = vsel %vm111, %v98, 0.0
  %v116 = vsel %vm112, %v97, 0.0
  %v117 = vpack.c.bf16 %v114, %v113
  %v118 = vpack.c.bf16 %v116, %v115
  %v119 = vld [vmem:[%s1] sm:$0x3]
  %v120 = vrot.slane %v88, 7
  %v121 = vrot.slane %v89, 7
  %v122 = vrot.slane %v90, 7
  %v123 = vrot.slane %v91, 7
  %vm124 = vcmp.lt.s32.totalorder %v35, 1
  %v125 = vsel %vm124, %v122, %v123
  %v126 = vsel %vm124, %v121, %v122
  %v127 = vsel %vm124, %v120, %v121
  %v128 = vsel %vm124, %v123, %v120
  %vm129 = vcmp.ge.s32.totalorder %v83, 1
  %vm130 = vcmp.ge.s32.totalorder %v84, 1
  %vm131 = vcmp.ge.s32.totalorder %v85, 1
  %vm132 = vcmp.ge.s32.totalorder %v86, 1
  %v133 = vsel %vm129, 1, 0
  %v134 = vsel %vm130, 1, 0
  %v135 = vsel %vm131, 1, 0
  %v136 = vsel %vm132, 1, 0
  %vm137 = vcmp.eq.s32.totalorder %v133, 1
  %vm138 = vcmp.eq.s32.totalorder %v134, 1
  %vm139 = vcmp.eq.s32.totalorder %v135, 1
  %vm140 = vcmp.eq.s32.totalorder %v136, 1
  %v141 = vsel %vm137, %v128, 0.0
  %v142 = vsel %vm138, %v127, 0.0
  %v143 = vsel %vm139, %v126, 0.0
  %v144 = vsel %vm140, %v125, 0.0
  %v145 = vpack.c.bf16 %v142, %v141
  %v146 = vpack.c.bf16 %v144, %v143
  %s147 = scalar_lea.vmem %s1, 2
  %v148 = vld [vmem:[%s147] sm:$0x3]
  %vm149 = vcmask 31744
  %v151 = vsel %vm149, %v145, 0
  %v154 = vsel %vm149, %v146, 0
  %vm156 = vcmask 1041408
  %v158 = vsel %vm156, %v148, 0
  %160 = vmatprep.subr.bf16.mxu0 0
  %161 = vmatpush1.bf16.msra.mxu0 %v158
  %162 = vmatprep.subr.bf16.mxu0 0
  %163 = vmatpush1.bf16.msra.mxu0 0
  %164 = vmatprep.subr.bf16.mxu0 0
  %165 = vmatpush1.bf16.msra.mxu0 0
  %166 = vmatprep.subr.bf16.mxu0 0
  %167 = vmatpush1.bf16.msra.mxu0 0
  %168 = vmatprep.subr.bf16.mxu0 0
  %169 = vmatpush1.bf16.msra.mxu0 0
  %170 = vmatprep.subr.bf16.mxu0 0
  %171 = vmatpush1.bf16.msra.mxu0 0
  %172 = vmatprep.subr.bf16.mxu0 0
  %173 = vmatpush1.bf16.msra.mxu0 0
  %174 = vmatprep.subr.bf16.mxu0 0
  %175 = vmatpush1.bf16.msra.mxu0 0
  %176 = vmatprep.subr.bf16.mxu0 0
  %177 = vmatpush1.bf16.msra.mxu0 0
  %178 = vmatprep.subr.bf16.mxu0 0
  %179 = vmatpush1.bf16.msra.mxu0 0
  %180 = vmatprep.subr.bf16.mxu0 0
  %181 = vmatpush1.bf16.msra.mxu0 0
  %182 = vmatprep.subr.bf16.mxu0 0
  %183 = vmatpush1.bf16.msra.mxu0 0
  %184 = vmatprep.subr.bf16.mxu0 0
  %185 = vmatpush1.bf16.msra.mxu0 0
  %186 = vmatprep.subr.bf16.mxu0 0
  %187 = vmatpush1.bf16.msra.mxu0 0
  %188 = vmatprep.subr.bf16.mxu0 0
  %189 = vmatpush1.bf16.msra.mxu0 0
  %190 = vmatprep.subr.bf16.mxu0 0
  %191 = vmatpush1.bf16.msra.mxu0 0
  %192 = vmatprep.mubr.bf16.mxu0 0
  %193 = vmatmul.mubr.bf16.gmra.mrb[0].mxu0 %v151
  %v194 = vpop.f32.mrb[0].mxu0
  %v195 = vadd.f32 0.0, %v194
  %v196 = vpop.f32.mrb[0].mxu0
  %v197 = vpop.f32.mrb[0].mxu0
  %v198 = vadd.f32 0.0, %v197
  %v199 = vpop.f32.mrb[0].mxu0
  %200 = vmatprep.mubr.bf16.mxu0 0
  %201 = vmatmul.mubr.bf16.gmra.mrb[0].mxu0 %v154
  %v202 = vpop.f32.mrb[0].mxu0
  %v203 = vadd.f32 0.0, %v202
  %v204 = vpop.f32.mrb[0].mxu0
  %v205 = vpop.f32.mrb[0].mxu0
  %v206 = vadd.f32 0.0, %v205
  %v207 = vpop.f32.mrb[0].mxu0
  %208 = vdwg.mxu0
  %v210 = vsel %vm149, %v117, 0
  %v213 = vsel %vm149, %v118, 0
  %v216 = vsel %vm156, %v119, 0
  %218 = vmatprep.subr.bf16.mxu0 0
  %219 = vmatpush1.bf16.msra.mxu0 %v216
  %220 = vmatprep.subr.bf16.mxu0 0
  %221 = vmatpush1.bf16.msra.mxu0 0
  %222 = vmatprep.subr.bf16.mxu0 0
  %223 = vmatpush1.bf16.msra.mxu0 0
  %224 = vmatprep.subr.bf16.mxu0 0
  %225 = vmatpush1.bf16.msra.mxu0 0
  %226 = vmatprep.subr.bf16.mxu0 0
  %227 = vmatpush1.bf16.msra.mxu0 0
  %228 = vmatprep.subr.bf16.mxu0 0
  %229 = vmatpush1.bf16.msra.mxu0 0
  %230 = vmatprep.subr.bf16.mxu0 0
  %231 = vmatpush1.bf16.msra.mxu0 0
  %232 = vmatprep.subr.bf16.mxu0 0
  %233 = vmatpush1.bf16.msra.mxu0 0
  %234 = vmatprep.subr.bf16.mxu0 0
  %235 = vmatpush1.bf16.msra.mxu0 0
  %236 = vmatprep.subr.bf16.mxu0 0
  %237 = vmatpush1.bf16.msra.mxu0 0
  %238 = vmatprep.subr.bf16.mxu0 0
  %239 = vmatpush1.bf16.msra.mxu0 0
  %240 = vmatprep.subr.bf16.mxu0 0
  %241 = vmatpush1.bf16.msra.mxu0 0
  %242 = vmatprep.subr.bf16.mxu0 0
  %243 = vmatpush1.bf16.msra.mxu0 0
  %244 = vmatprep.subr.bf16.mxu0 0
  %245 = vmatpush1.bf16.msra.mxu0 0
  %246 = vmatprep.subr.bf16.mxu0 0
  %247 = vmatpush1.bf16.msra.mxu0 0
  %248 = vmatprep.subr.bf16.mxu0 0
  %249 = vmatpush1.bf16.msra.mxu0 0
  %250 = vmatprep.mubr.bf16.mxu0 0
  %251 = vmatmul.mubr.bf16.gmra.mrb[0].mxu0 %v210
  %v252 = vpop.f32.mrb[0].mxu0
  %v253 = vadd.f32 %v195, %v252
  %v254 = vpop.f32.mrb[0].mxu0
  %v255 = vpop.f32.mrb[0].mxu0
  %v256 = vadd.f32 %v198, %v255
  %v257 = vpop.f32.mrb[0].mxu0
  %258 = vmatprep.mubr.bf16.mxu0 0
  %259 = vmatmul.mubr.bf16.gmra.mrb[0].mxu0 %v213
  %v260 = vpop.f32.mrb[0].mxu0
  %v261 = vadd.f32 %v203, %v260
  %v262 = vpop.f32.mrb[0].mxu0
  %v263 = vpop.f32.mrb[0].mxu0
  %v264 = vadd.f32 %v206, %v263
  %v265 = vpop.f32.mrb[0].mxu0
  %266 = vdwg.mxu0
  %v267 = vpack.c.bf16 %v89, %v88
  %v268 = vpack.c.bf16 %v91, %v90
  %s269 = scalar_lea.vmem %s1, 4
  %v270 = vld [vmem:[%s269] sm:$0x3]
  %v272 = vsel %vm149, %v267, 0
  %v275 = vsel %vm149, %v268, 0
  %v278 = vsel %vm156, %v270, 0
  %280 = vmatprep.subr.bf16.mxu0 0
  %281 = vmatpush1.bf16.msra.mxu0 %v278
  %282 = vmatprep.subr.bf16.mxu0 0
  %283 = vmatpush1.bf16.msra.mxu0 0
  %284 = vmatprep.subr.bf16.mxu0 0
  %285 = vmatpush1.bf16.msra.mxu0 0
  %286 = vmatprep.subr.bf16.mxu0 0
  %287 = vmatpush1.bf16.msra.mxu0 0
  %288 = vmatprep.subr.bf16.mxu0 0
  %289 = vmatpush1.bf16.msra.mxu0 0
  %290 = vmatprep.subr.bf16.mxu0 0
  %291 = vmatpush1.bf16.msra.mxu0 0
  %292 = vmatprep.subr.bf16.mxu0 0
  %293 = vmatpush1.bf16.msra.mxu0 0
  %294 = vmatprep.subr.bf16.mxu0 0
  %295 = vmatpush1.bf16.msra.mxu0 0
  %296 = vmatprep.subr.bf16.mxu0 0
  %297 = vmatpush1.bf16.msra.mxu0 0
  %298 = vmatprep.subr.bf16.mxu0 0
  %299 = vmatpush1.bf16.msra.mxu0 0
  %300 = vmatprep.subr.bf16.mxu0 0
  %301 = vmatpush1.bf16.msra.mxu0 0
  %302 = vmatprep.subr.bf16.mxu0 0
  %303 = vmatpush1.bf16.msra.mxu0 0
  %304 = vmatprep.subr.bf16.mxu0 0
  %305 = vmatpush1.bf16.msra.mxu0 0
  %306 = vmatprep.subr.bf16.mxu0 0
  %307 = vmatpush1.bf16.msra.mxu0 0
  %308 = vmatprep.subr.bf16.mxu0 0
  %309 = vmatpush1.bf16.msra.mxu0 0
  %310 = vmatprep.subr.bf16.mxu0 0
  %311 = vmatpush1.bf16.msra.mxu0 0
  %312 = vmatprep.mubr.bf16.mxu0 0
  %313 = vmatmul.mubr.bf16.gmra.mrb[0].mxu0 %v272
  %v314 = vpop.f32.mrb[0].mxu0
  %v315 = vadd.f32 0.0, %v314
  %v316 = vpop.f32.mrb[0].mxu0
  %v317 = vpop.f32.mrb[0].mxu0
  %v318 = vadd.f32 0.0, %v317
  %v319 = vpop.f32.mrb[0].mxu0
  %320 = vmatprep.mubr.bf16.mxu0 0
  %321 = vmatmul.mubr.bf16.gmra.mrb[0].mxu0 %v275
  %v322 = vpop.f32.mrb[0].mxu0
  %v323 = vadd.f32 0.0, %v322
  %v324 = vpop.f32.mrb[0].mxu0
  %v325 = vpop.f32.mrb[0].mxu0
  %v326 = vadd.f32 0.0, %v325
  %v327 = vpop.f32.mrb[0].mxu0
  %328 = vdwg.mxu0
  %v329 = vadd.f32 %v253, %v315
  %v330 = vadd.f32 %v256, %v318
  %v331 = vadd.f32 %v261, %v323
  %v332 = vadd.f32 %v264, %v326
  %v333 = vlaneseq
  %v334 = vshrl.u32 %v333, 7
  %v335 = vsub.s32 0, %v334
  %v336 = vrot.slane %v87, %v335
  %v337 = vadd.f32 %v329, %v336
  %v338 = vadd.f32 %v330, %v336
  %v339 = vadd.f32 %v331, %v336
  %v340 = vadd.f32 %v332, %v336
  %v341 = vmax.f32 %v337, 0.0
  %v342 = vmax.f32 %v338, 0.0
  %v343 = vmax.f32 %v339, 0.0
  %v344 = vmax.f32 %v340, 0.0
  %v345 = vrot.slane %v341, 6
  %v346 = vrot.slane %v342, 6
  %v347 = vrot.slane %v343, 6
  %v348 = vrot.slane %v344, 6
  %v349 = vsel %vm96, %v347, %v348
  %v350 = vsel %vm96, %v346, %v347
  %v351 = vsel %vm96, %v345, %v346
  %v352 = vsel %vm96, %v348, %v345
  %v353 = vsel %vm109, %v352, 0.0
  %v354 = vsel %vm110, %v351, 0.0
  %v355 = vsel %vm111, %v350, 0.0
  %v356 = vsel %vm112, %v349, 0.0
  %v357 = vpack.c.bf16 %v354, %v353
  %v358 = vpack.c.bf16 %v356, %v355
  %v359 = vld [vmem:[%s2] sm:$0xf]
  %v360 = vld [vmem:[%s2 + $0x4] sm:$0xf]
  %v361 = vld [vmem:[%s2 + $0x8] sm:$0xf]
  %v362 = vld [vmem:[%s2 + $0xc] sm:$0xf]
  %v363 = vrot.slane %v341, 7
  %v364 = vrot.slane %v342, 7
  %v365 = vrot.slane %v343, 7
  %v366 = vrot.slane %v344, 7
  %v367 = vsel %vm124, %v365, %v366
  %v368 = vsel %vm124, %v364, %v365
  %v369 = vsel %vm124, %v363, %v364
  %v370 = vsel %vm124, %v366, %v363
  %v371 = vsel %vm137, %v370, 0.0
  %v372 = vsel %vm138, %v369, 0.0
  %v373 = vsel %vm139, %v368, 0.0
  %v374 = vsel %vm140, %v367, 0.0
  %v375 = vpack.c.bf16 %v372, %v371
  %v376 = vpack.c.bf16 %v374, %v373
  %s377 = scalar_lea.vmem %s2, 16
  %v378 = vld [vmem:[%s377] sm:$0xf]
  %v379 = vld [vmem:[%s377 + $0x4] sm:$0xf]
  %v380 = vld [vmem:[%s377 + $0x8] sm:$0xf]
  %v381 = vld [vmem:[%s377 + $0xc] sm:$0xf]
  %v386 = vunpack.c.l.b16 %v378
  %v387 = vunpack.c.l.b16 %v379
  %v388 = vunpack.c.l.b16 %v380
  %v389 = vunpack.c.l.b16 %v381
  %v390 = vpack.c.b16 %v387, %v386
  %v391 = vpack.c.b16 %v389, %v388
  %vm394 = vcmask 261120
  %v396 = vsel %vm394, %v375, 0
  %v399 = vsel %vm394, %v376, 0
  %401 = vmatprep.subr.bf16.mxu0 0
  %402 = vmatpush1.bf16.msra.mxu0 %v390
  %403 = vmatprep.subr.bf16.mxu0 0
  %404 = vmatpush1.bf16.msra.mxu0 %v391
  %405 = vmatprep.subr.bf16.mxu0 0
  %406 = vmatpush1.bf16.msra.mxu0 0
  %407 = vmatprep.subr.bf16.mxu0 0
  %408 = vmatpush1.bf16.msra.mxu0 0
  %409 = vmatprep.subr.bf16.mxu0 0
  %410 = vmatpush1.bf16.msra.mxu0 0
  %411 = vmatprep.subr.bf16.mxu0 0
  %412 = vmatpush1.bf16.msra.mxu0 0
  %413 = vmatprep.subr.bf16.mxu0 0
  %414 = vmatpush1.bf16.msra.mxu0 0
  %415 = vmatprep.subr.bf16.mxu0 0
  %416 = vmatpush1.bf16.msra.mxu0 0
  %417 = vmatprep.subr.bf16.mxu0 0
  %418 = vmatpush1.bf16.msra.mxu0 0
  %419 = vmatprep.subr.bf16.mxu0 0
  %420 = vmatpush1.bf16.msra.mxu0 0
  %421 = vmatprep.subr.bf16.mxu0 0
  %422 = vmatpush1.bf16.msra.mxu0 0
  %423 = vmatprep.subr.bf16.mxu0 0
  %424 = vmatpush1.bf16.msra.mxu0 0
  %425 = vmatprep.subr.bf16.mxu0 0
  %426 = vmatpush1.bf16.msra.mxu0 0
  %427 = vmatprep.subr.bf16.mxu0 0
  %428 = vmatpush1.bf16.msra.mxu0 0
  %429 = vmatprep.subr.bf16.mxu0 0
  %430 = vmatpush1.bf16.msra.mxu0 0
  %431 = vmatprep.subr.bf16.mxu0 0
  %432 = vmatpush1.bf16.msra.mxu0 0
  %433 = vmatprep.mubr.bf16.mxu0 0
  %434 = vmatmul.mubr.bf16.gmra.mrb[0].mxu0 %v396
  %v435 = vpop.f32.mrb[0].mxu0
  %v436 = vadd.f32 0.0, %v435
  %v437 = vpop.f32.mrb[0].mxu0
  %v438 = vpop.f32.mrb[0].mxu0
  %v439 = vadd.f32 0.0, %v438
  %v440 = vpop.f32.mrb[0].mxu0
  %441 = vmatprep.mubr.bf16.mxu0 0
  %442 = vmatmul.mubr.bf16.gmra.mrb[0].mxu0 %v399
  %v443 = vpop.f32.mrb[0].mxu0
  %v444 = vadd.f32 0.0, %v443
  %v445 = vpop.f32.mrb[0].mxu0
  %v446 = vpop.f32.mrb[0].mxu0
  %v447 = vadd.f32 0.0, %v446
  %v448 = vpop.f32.mrb[0].mxu0
  %449 = vdwg.mxu0
  %v454 = vunpack.c.l.b16 %v359
  %v455 = vunpack.c.l.b16 %v360
  %v456 = vunpack.c.l.b16 %v361
  %v457 = vunpack.c.l.b16 %v362
  %v458 = vpack.c.b16 %v455, %v454
  %v459 = vpack.c.b16 %v457, %v456
  %v463 = vsel %vm394, %v357, 0
  %v466 = vsel %vm394, %v358, 0
  %468 = vmatprep.subr.bf16.mxu0 0
  %469 = vmatpush1.bf16.msra.mxu0 %v458
  %470 = vmatprep.subr.bf16.mxu0 0
  %471 = vmatpush1.bf16.msra.mxu0 %v459
  %472 = vmatprep.subr.bf16.mxu0 0
  %473 = vmatpush1.bf16.msra.mxu0 0
  %474 = vmatprep.subr.bf16.mxu0 0
  %475 = vmatpush1.bf16.msra.mxu0 0
  %476 = vmatprep.subr.bf16.mxu0 0
  %477 = vmatpush1.bf16.msra.mxu0 0
  %478 = vmatprep.subr.bf16.mxu0 0
  %479 = vmatpush1.bf16.msra.mxu0 0
  %480 = vmatprep.subr.bf16.mxu0 0
  %481 = vmatpush1.bf16.msra.mxu0 0
  %482 = vmatprep.subr.bf16.mxu0 0
  %483 = vmatpush1.bf16.msra.mxu0 0
  %484 = vmatprep.subr.bf16.mxu0 0
  %485 = vmatpush1.bf16.msra.mxu0 0
  %486 = vmatprep.subr.bf16.mxu0 0
  %487 = vmatpush1.bf16.msra.mxu0 0
  %488 = vmatprep.subr.bf16.mxu0 0
  %489 = vmatpush1.bf16.msra.mxu0 0
  %490 = vmatprep.subr.bf16.mxu0 0
  %491 = vmatpush1.bf16.msra.mxu0 0
  %492 = vmatprep.subr.bf16.mxu0 0
  %493 = vmatpush1.bf16.msra.mxu0 0
  %494 = vmatprep.subr.bf16.mxu0 0
  %495 = vmatpush1.bf16.msra.mxu0 0
  %496 = vmatprep.subr.bf16.mxu0 0
  %497 = vmatpush1.bf16.msra.mxu0 0
  %498 = vmatprep.subr.bf16.mxu0 0
  %499 = vmatpush1.bf16.msra.mxu0 0
  %500 = vmatprep.mubr.bf16.mxu0 0
  %501 = vmatmul.mubr.bf16.gmra.mrb[0].mxu0 %v463
  %v502 = vpop.f32.mrb[0].mxu0
  %v503 = vadd.f32 %v436, %v502
  %v504 = vpop.f32.mrb[0].mxu0
  %v505 = vpop.f32.mrb[0].mxu0
  %v506 = vadd.f32 %v439, %v505
  %v507 = vpop.f32.mrb[0].mxu0
  %508 = vmatprep.mubr.bf16.mxu0 0
  %509 = vmatmul.mubr.bf16.gmra.mrb[0].mxu0 %v466
  %v510 = vpop.f32.mrb[0].mxu0
  %v511 = vadd.f32 %v444, %v510
  %v512 = vpop.f32.mrb[0].mxu0
  %v513 = vpop.f32.mrb[0].mxu0
  %v514 = vadd.f32 %v447, %v513
  %v515 = vpop.f32.mrb[0].mxu0
  %516 = vdwg.mxu0
  %v517 = vpack.c.bf16 %v342, %v341
  %v518 = vpack.c.bf16 %v344, %v343
  %s519 = scalar_lea.vmem %s2, 32
  %v520 = vld [vmem:[%s519] sm:$0xf]
  %v521 = vld [vmem:[%s519 + $0x4] sm:$0xf]
  %v522 = vld [vmem:[%s519 + $0x8] sm:$0xf]
  %v523 = vld [vmem:[%s519 + $0xc] sm:$0xf]
  %v528 = vunpack.c.l.b16 %v520
  %v529 = vunpack.c.l.b16 %v521
  %v530 = vunpack.c.l.b16 %v522
  %v531 = vunpack.c.l.b16 %v523
  %v532 = vpack.c.b16 %v529, %v528
  %v533 = vpack.c.b16 %v531, %v530
  %v537 = vsel %vm394, %v517, 0
  %v540 = vsel %vm394, %v518, 0
  %542 = vmatprep.subr.bf16.mxu0 0
  %543 = vmatpush1.bf16.msra.mxu0 %v532
  %544 = vmatprep.subr.bf16.mxu0 0
  %545 = vmatpush1.bf16.msra.mxu0 %v533
  %546 = vmatprep.subr.bf16.mxu0 0
  %547 = vmatpush1.bf16.msra.mxu0 0
  %548 = vmatprep.subr.bf16.mxu0 0
  %549 = vmatpush1.bf16.msra.mxu0 0
  %550 = vmatprep.subr.bf16.mxu0 0
  %551 = vmatpush1.bf16.msra.mxu0 0
  %552 = vmatprep.subr.bf16.mxu0 0
  %553 = vmatpush1.bf16.msra.mxu0 0
  %554 = vmatprep.subr.bf16.mxu0 0
  %555 = vmatpush1.bf16.msra.mxu0 0
  %556 = vmatprep.subr.bf16.mxu0 0
  %557 = vmatpush1.bf16.msra.mxu0 0
  %558 = vmatprep.subr.bf16.mxu0 0
  %559 = vmatpush1.bf16.msra.mxu0 0
  %560 = vmatprep.subr.bf16.mxu0 0
  %561 = vmatpush1.bf16.msra.mxu0 0
  %562 = vmatprep.subr.bf16.mxu0 0
  %563 = vmatpush1.bf16.msra.mxu0 0
  %564 = vmatprep.subr.bf16.mxu0 0
  %565 = vmatpush1.bf16.msra.mxu0 0
  %566 = vmatprep.subr.bf16.mxu0 0
  %567 = vmatpush1.bf16.msra.mxu0 0
  %568 = vmatprep.subr.bf16.mxu0 0
  %569 = vmatpush1.bf16.msra.mxu0 0
  %570 = vmatprep.subr.bf16.mxu0 0
  %571 = vmatpush1.bf16.msra.mxu0 0
  %572 = vmatprep.subr.bf16.mxu0 0
  %573 = vmatpush1.bf16.msra.mxu0 0
  %574 = vmatprep.mubr.bf16.mxu0 0
  %575 = vmatmul.mubr.bf16.gmra.mrb[0].mxu0 %v537
  %v576 = vpop.f32.mrb[0].mxu0
  %v577 = vadd.f32 0.0, %v576
  %v578 = vpop.f32.mrb[0].mxu0
  %v579 = vpop.f32.mrb[0].mxu0
  %v580 = vadd.f32 0.0, %v579
  %v581 = vpop.f32.mrb[0].mxu0
  %582 = vmatprep.mubr.bf16.mxu0 0
  %583 = vmatmul.mubr.bf16.gmra.mrb[0].mxu0 %v540
  %v584 = vpop.f32.mrb[0].mxu0
  %v585 = vadd.f32 0.0, %v584
  %v586 = vpop.f32.mrb[0].mxu0
  %v587 = vpop.f32.mrb[0].mxu0
  %v588 = vadd.f32 0.0, %v587
  %v589 = vpop.f32.mrb[0].mxu0
  %590 = vdwg.mxu0
  %v591 = vadd.f32 %v503, %v577
  %v592 = vadd.f32 %v506, %v580
  %v593 = vadd.f32 %v511, %v585
  %v594 = vadd.f32 %v514, %v588
  %v595 = vlaneseq
  %v596 = vshrl.u32 %v595, 7
  %v597 = vsub.s32 1, %v596
  %v598 = vrot.slane %v87, %v597
  %v599 = vadd.f32 %v591, %v598
  %v600 = vadd.f32 %v592, %v598
  %v601 = vadd.f32 %v593, %v598
  %v602 = vadd.f32 %v594, %v598
  %v603 = vmax.f32 %v599, 0.0
  %v604 = vmax.f32 %v600, 0.0
  %v605 = vmax.f32 %v601, 0.0
  %v606 = vmax.f32 %v602, 0.0
  %v607 = vld [vmem:[%s3] sm:$0x3]
  %v608 = vlaneseq
  %v609 = vshrl.u32 %v608, 7
  %v610 = vsub.s32 2, %v609
  %v611 = vrot.slane %v87, %v610
  %v613 = vsel %vm156, %v607, 0
  %615 = vmatprep.subr.bf16.mxu0 0
  %616 = vmatpush1.bf16.msra.mxu0 %v613
  %617 = vmatprep.subr.bf16.mxu0 0
  %618 = vmatpush1.bf16.msra.mxu0 0
  %619 = vmatprep.subr.bf16.mxu0 0
  %620 = vmatpush1.bf16.msra.mxu0 0
  %621 = vmatprep.subr.bf16.mxu0 0
  %622 = vmatpush1.bf16.msra.mxu0 0
  %623 = vmatprep.subr.bf16.mxu0 0
  %624 = vmatpush1.bf16.msra.mxu0 0
  %625 = vmatprep.subr.bf16.mxu0 0
  %626 = vmatpush1.bf16.msra.mxu0 0
  %627 = vmatprep.subr.bf16.mxu0 0
  %628 = vmatpush1.bf16.msra.mxu0 0
  %629 = vmatprep.subr.bf16.mxu0 0
  %630 = vmatpush1.bf16.msra.mxu0 0
  %631 = vmatprep.subr.bf16.mxu0 0
  %632 = vmatpush1.bf16.msra.mxu0 0
  %633 = vmatprep.subr.bf16.mxu0 0
  %634 = vmatpush1.bf16.msra.mxu0 0
  %635 = vmatprep.subr.bf16.mxu0 0
  %636 = vmatpush1.bf16.msra.mxu0 0
  %637 = vmatprep.subr.bf16.mxu0 0
  %638 = vmatpush1.bf16.msra.mxu0 0
  %639 = vmatprep.subr.bf16.mxu0 0
  %640 = vmatpush1.bf16.msra.mxu0 0
  %641 = vmatprep.subr.bf16.mxu0 0
  %642 = vmatpush1.bf16.msra.mxu0 0
  %643 = vmatprep.subr.bf16.mxu0 0
  %644 = vmatpush1.bf16.msra.mxu0 0
  %645 = vmatprep.subr.bf16.mxu0 0
  %646 = vmatpush1.bf16.msra.mxu0 0
  %647 = vmatprep.mubr.bf16.mxu0 0
  %648 = vmatmul.mubr.bf16.gmra.mrb[0].mxu0 %v272
  %v649 = vpop.f32.mrb[0].mxu0
  %v650 = vadd.f32 %v611, %v649
  %v651 = vpop.f32.mrb[0].mxu0
  %v652 = vpop.f32.mrb[0].mxu0
  %v653 = vadd.f32 %v611, %v652
  %v654 = vpop.f32.mrb[0].mxu0
  %655 = vmatprep.mubr.bf16.mxu0 0
  %656 = vmatmul.mubr.bf16.gmra.mrb[0].mxu0 %v275
  %v657 = vpop.f32.mrb[0].mxu0
  %v658 = vadd.f32 %v611, %v657
  %v659 = vpop.f32.mrb[0].mxu0
  %v660 = vpop.f32.mrb[0].mxu0
  %v661 = vadd.f32 %v611, %v660
  %v662 = vpop.f32.mrb[0].mxu0
  %663 = vdwg.mxu0
  %v664 = vadd.f32 %v603, %v650
  %v665 = vadd.f32 %v604, %v653
  %v666 = vadd.f32 %v605, %v658
  %v667 = vadd.f32 %v606, %v661
  %v668 = vmax.f32 %v664, 0.0
  %v669 = vmax.f32 %v665, 0.0
  %v670 = vmax.f32 %v666, 0.0
  %v671 = vmax.f32 %v667, 0.0
  %v672 = vrot.slane %v668, 4
  %v673 = vrot.slane %v669, 4
  %v674 = vrot.slane %v670, 4
  %v675 = vrot.slane %v671, 4
  %vm676 = vcmp.lt.s32.totalorder %v35, 4
  %v677 = vsel %vm676, %v674, %v675
  %v678 = vsel %vm676, %v673, %v674
  %v679 = vsel %vm676, %v672, %v673
  %v680 = vsel %vm676, %v675, %v672
  %vm681 = vcmp.ge.s32.totalorder %v83, 4
  %vm682 = vcmp.ge.s32.totalorder %v84, 4
  %vm683 = vcmp.ge.s32.totalorder %v85, 4
  %vm684 = vcmp.ge.s32.totalorder %v86, 4
  %v685 = vsel %vm681, 1, 0
  %v686 = vsel %vm682, 1, 0
  %v687 = vsel %vm683, 1, 0
  %v688 = vsel %vm684, 1, 0
  %vm689 = vcmp.eq.s32.totalorder %v685, 1
  %vm690 = vcmp.eq.s32.totalorder %v686, 1
  %vm691 = vcmp.eq.s32.totalorder %v687, 1
  %vm692 = vcmp.eq.s32.totalorder %v688, 1
  %v693 = vsel %vm689, %v680, 0.0
  %v694 = vsel %vm690, %v679, 0.0
  %v695 = vsel %vm691, %v678, 0.0
  %v696 = vsel %vm692, %v677, 0.0
  %v697 = vpack.c.bf16 %v694, %v693
  %v698 = vpack.c.bf16 %v696, %v695
  %v699 = vld [vmem:[%s4] sm:$0xf]
  %v700 = vld [vmem:[%s4 + $0x4] sm:$0xf]
  %v701 = vld [vmem:[%s4 + $0x8] sm:$0xf]
  %v702 = vld [vmem:[%s4 + $0xc] sm:$0xf]
  %v703 = vrot.slane %v668, 6
  %v704 = vrot.slane %v669, 6
  %v705 = vrot.slane %v670, 6
  %v706 = vrot.slane %v671, 6
  %v707 = vsel %vm96, %v705, %v706
  %v708 = vsel %vm96, %v704, %v705
  %v709 = vsel %vm96, %v703, %v704
  %v710 = vsel %vm96, %v706, %v703
  %v711 = vsel %vm109, %v710, 0.0
  %v712 = vsel %vm110, %v709, 0.0
  %v713 = vsel %vm111, %v708, 0.0
  %v714 = vsel %vm112, %v707, 0.0
  %v715 = vpack.c.bf16 %v712, %v711
  %v716 = vpack.c.bf16 %v714, %v713
  %s717 = scalar_lea.vmem %s4, 16
  %v718 = vld [vmem:[%s717] sm:$0xf]
  %v719 = vld [vmem:[%s717 + $0x4] sm:$0xf]
  %v720 = vld [vmem:[%s717 + $0x8] sm:$0xf]
  %v721 = vld [vmem:[%s717 + $0xc] sm:$0xf]
  %v726 = vunpack.c.l.b16 %v718
  %v727 = vunpack.c.l.b16 %v719
  %v728 = vunpack.c.l.b16 %v720
  %v729 = vunpack.c.l.b16 %v721
  %v730 = vpack.c.b16 %v727, %v726
  %v731 = vpack.c.b16 %v729, %v728
  %v735 = vsel %vm394, %v715, 0
  %v738 = vsel %vm394, %v716, 0
  %740 = vmatprep.subr.bf16.mxu0 0
  %741 = vmatpush1.bf16.msra.mxu0 %v730
  %742 = vmatprep.subr.bf16.mxu0 0
  %743 = vmatpush1.bf16.msra.mxu0 %v731
  %744 = vmatprep.subr.bf16.mxu0 0
  %745 = vmatpush1.bf16.msra.mxu0 0
  %746 = vmatprep.subr.bf16.mxu0 0
  %747 = vmatpush1.bf16.msra.mxu0 0
  %748 = vmatprep.subr.bf16.mxu0 0
  %749 = vmatpush1.bf16.msra.mxu0 0
  %750 = vmatprep.subr.bf16.mxu0 0
  %751 = vmatpush1.bf16.msra.mxu0 0
  %752 = vmatprep.subr.bf16.mxu0 0
  %753 = vmatpush1.bf16.msra.mxu0 0
  %754 = vmatprep.subr.bf16.mxu0 0
  %755 = vmatpush1.bf16.msra.mxu0 0
  %756 = vmatprep.subr.bf16.mxu0 0
  %757 = vmatpush1.bf16.msra.mxu0 0
  %758 = vmatprep.subr.bf16.mxu0 0
  %759 = vmatpush1.bf16.msra.mxu0 0
  %760 = vmatprep.subr.bf16.mxu0 0
  %761 = vmatpush1.bf16.msra.mxu0 0
  %762 = vmatprep.subr.bf16.mxu0 0
  %763 = vmatpush1.bf16.msra.mxu0 0
  %764 = vmatprep.subr.bf16.mxu0 0
  %765 = vmatpush1.bf16.msra.mxu0 0
  %766 = vmatprep.subr.bf16.mxu0 0
  %767 = vmatpush1.bf16.msra.mxu0 0
  %768 = vmatprep.subr.bf16.mxu0 0
  %769 = vmatpush1.bf16.msra.mxu0 0
  %770 = vmatprep.subr.bf16.mxu0 0
  %771 = vmatpush1.bf16.msra.mxu0 0
  %772 = vmatprep.mubr.bf16.mxu0 0
  %773 = vmatmul.mubr.bf16.gmra.mrb[0].mxu0 %v735
  %v774 = vpop.f32.mrb[0].mxu0
  %v775 = vadd.f32 0.0, %v774
  %v776 = vpop.f32.mrb[0].mxu0
  %v777 = vpop.f32.mrb[0].mxu0
  %v778 = vadd.f32 0.0, %v777
  %v779 = vpop.f32.mrb[0].mxu0
  %780 = vmatprep.mubr.bf16.mxu0 0
  %781 = vmatmul.mubr.bf16.gmra.mrb[0].mxu0 %v738
  %v782 = vpop.f32.mrb[0].mxu0
  %v783 = vadd.f32 0.0, %v782
  %v784 = vpop.f32.mrb[0].mxu0
  %v785 = vpop.f32.mrb[0].mxu0
  %v786 = vadd.f32 0.0, %v785
  %v787 = vpop.f32.mrb[0].mxu0
  %788 = vdwg.mxu0
  %v793 = vunpack.c.l.b16 %v699
  %v794 = vunpack.c.l.b16 %v700
  %v795 = vunpack.c.l.b16 %v701
  %v796 = vunpack.c.l.b16 %v702
  %v797 = vpack.c.b16 %v794, %v793
  %v798 = vpack.c.b16 %v796, %v795
  %v802 = vsel %vm394, %v697, 0
  %v805 = vsel %vm394, %v698, 0
  %807 = vmatprep.subr.bf16.mxu0 0
  %808 = vmatpush1.bf16.msra.mxu0 %v797
  %809 = vmatprep.subr.bf16.mxu0 0
  %810 = vmatpush1.bf16.msra.mxu0 %v798
  %811 = vmatprep.subr.bf16.mxu0 0
  %812 = vmatpush1.bf16.msra.mxu0 0
  %813 = vmatprep.subr.bf16.mxu0 0
  %814 = vmatpush1.bf16.msra.mxu0 0
  %815 = vmatprep.subr.bf16.mxu0 0
  %816 = vmatpush1.bf16.msra.mxu0 0
  %817 = vmatprep.subr.bf16.mxu0 0
  %818 = vmatpush1.bf16.msra.mxu0 0
  %819 = vmatprep.subr.bf16.mxu0 0
  %820 = vmatpush1.bf16.msra.mxu0 0
  %821 = vmatprep.subr.bf16.mxu0 0
  %822 = vmatpush1.bf16.msra.mxu0 0
  %823 = vmatprep.subr.bf16.mxu0 0
  %824 = vmatpush1.bf16.msra.mxu0 0
  %825 = vmatprep.subr.bf16.mxu0 0
  %826 = vmatpush1.bf16.msra.mxu0 0
  %827 = vmatprep.subr.bf16.mxu0 0
  %828 = vmatpush1.bf16.msra.mxu0 0
  %829 = vmatprep.subr.bf16.mxu0 0
  %830 = vmatpush1.bf16.msra.mxu0 0
  %831 = vmatprep.subr.bf16.mxu0 0
  %832 = vmatpush1.bf16.msra.mxu0 0
  %833 = vmatprep.subr.bf16.mxu0 0
  %834 = vmatpush1.bf16.msra.mxu0 0
  %835 = vmatprep.subr.bf16.mxu0 0
  %836 = vmatpush1.bf16.msra.mxu0 0
  %837 = vmatprep.subr.bf16.mxu0 0
  %838 = vmatpush1.bf16.msra.mxu0 0
  %839 = vmatprep.mubr.bf16.mxu0 0
  %840 = vmatmul.mubr.bf16.gmra.mrb[0].mxu0 %v802
  %v841 = vpop.f32.mrb[0].mxu0
  %v842 = vadd.f32 %v775, %v841
  %v843 = vpop.f32.mrb[0].mxu0
  %v844 = vpop.f32.mrb[0].mxu0
  %v845 = vadd.f32 %v778, %v844
  %v846 = vpop.f32.mrb[0].mxu0
  %847 = vmatprep.mubr.bf16.mxu0 0
  %848 = vmatmul.mubr.bf16.gmra.mrb[0].mxu0 %v805
  %v849 = vpop.f32.mrb[0].mxu0
  %v850 = vadd.f32 %v783, %v849
  %v851 = vpop.f32.mrb[0].mxu0
  %v852 = vpop.f32.mrb[0].mxu0
  %v853 = vadd.f32 %v786, %v852
  %v854 = vpop.f32.mrb[0].mxu0
  %855 = vdwg.mxu0
  %v856 = vpack.c.bf16 %v669, %v668
  %v857 = vpack.c.bf16 %v671, %v670
  %s858 = scalar_lea.vmem %s4, 32
  %v859 = vld [vmem:[%s858] sm:$0xf]
  %v860 = vld [vmem:[%s858 + $0x4] sm:$0xf]
  %v861 = vld [vmem:[%s858 + $0x8] sm:$0xf]
  %v862 = vld [vmem:[%s858 + $0xc] sm:$0xf]
  %v867 = vunpack.c.l.b16 %v859
  %v868 = vunpack.c.l.b16 %v860
  %v869 = vunpack.c.l.b16 %v861
  %v870 = vunpack.c.l.b16 %v862
  %v871 = vpack.c.b16 %v868, %v867
  %v872 = vpack.c.b16 %v870, %v869
  %v876 = vsel %vm394, %v856, 0
  %v879 = vsel %vm394, %v857, 0
  %881 = vmatprep.subr.bf16.mxu0 0
  %882 = vmatpush1.bf16.msra.mxu0 %v871
  %883 = vmatprep.subr.bf16.mxu0 0
  %884 = vmatpush1.bf16.msra.mxu0 %v872
  %885 = vmatprep.subr.bf16.mxu0 0
  %886 = vmatpush1.bf16.msra.mxu0 0
  %887 = vmatprep.subr.bf16.mxu0 0
  %888 = vmatpush1.bf16.msra.mxu0 0
  %889 = vmatprep.subr.bf16.mxu0 0
  %890 = vmatpush1.bf16.msra.mxu0 0
  %891 = vmatprep.subr.bf16.mxu0 0
  %892 = vmatpush1.bf16.msra.mxu0 0
  %893 = vmatprep.subr.bf16.mxu0 0
  %894 = vmatpush1.bf16.msra.mxu0 0
  %895 = vmatprep.subr.bf16.mxu0 0
  %896 = vmatpush1.bf16.msra.mxu0 0
  %897 = vmatprep.subr.bf16.mxu0 0
  %898 = vmatpush1.bf16.msra.mxu0 0
  %899 = vmatprep.subr.bf16.mxu0 0
  %900 = vmatpush1.bf16.msra.mxu0 0
  %901 = vmatprep.subr.bf16.mxu0 0
  %902 = vmatpush1.bf16.msra.mxu0 0
  %903 = vmatprep.subr.bf16.mxu0 0
  %904 = vmatpush1.bf16.msra.mxu0 0
  %905 = vmatprep.subr.bf16.mxu0 0
  %906 = vmatpush1.bf16.msra.mxu0 0
  %907 = vmatprep.subr.bf16.mxu0 0
  %908 = vmatpush1.bf16.msra.mxu0 0
  %909 = vmatprep.subr.bf16.mxu0 0
  %910 = vmatpush1.bf16.msra.mxu0 0
  %911 = vmatprep.subr.bf16.mxu0 0
  %912 = vmatpush1.bf16.msra.mxu0 0
  %913 = vmatprep.mubr.bf16.mxu0 0
  %914 = vmatmul.mubr.bf16.gmra.mrb[0].mxu0 %v876
  %v915 = vpop.f32.mrb[0].mxu0
  %v916 = vadd.f32 0.0, %v915
  %v917 = vpop.f32.mrb[0].mxu0
  %v918 = vpop.f32.mrb[0].mxu0
  %v919 = vadd.f32 0.0, %v918
  %v920 = vpop.f32.mrb[0].mxu0
  %921 = vmatprep.mubr.bf16.mxu0 0
  %922 = vmatmul.mubr.bf16.gmra.mrb[0].mxu0 %v879
  %v923 = vpop.f32.mrb[0].mxu0
  %v924 = vadd.f32 0.0, %v923
  %v925 = vpop.f32.mrb[0].mxu0
  %v926 = vpop.f32.mrb[0].mxu0
  %v927 = vadd.f32 0.0, %v926
  %v928 = vpop.f32.mrb[0].mxu0
  %929 = vdwg.mxu0
  %v930 = vadd.f32 %v842, %v916
  %v931 = vadd.f32 %v845, %v919
  %v932 = vadd.f32 %v850, %v924
  %v933 = vadd.f32 %v853, %v927
  %v934 = vlaneseq
  %v935 = vshrl.u32 %v934, 7
  %v936 = vsub.s32 3, %v935
  %v937 = vrot.slane %v87, %v936
  %v938 = vadd.f32 %v930, %v937
  %v939 = vadd.f32 %v931, %v937
  %v940 = vadd.f32 %v932, %v937
  %v941 = vadd.f32 %v933, %v937
  %v942 = vmax.f32 %v938, 0.0
  %v943 = vmax.f32 %v939, 0.0
  %v944 = vmax.f32 %v940, 0.0
  %v945 = vmax.f32 %v941, 0.0
  %v946 = vrot.slane %v942, 4
  %v947 = vrot.slane %v943, 4
  %v948 = vrot.slane %v944, 4
  %v949 = vrot.slane %v945, 4
  %v950 = vsel %vm676, %v948, %v949
  %v951 = vsel %vm676, %v947, %v948
  %v952 = vsel %vm676, %v946, %v947
  %v953 = vsel %vm676, %v949, %v946
  %v954 = vsel %vm689, %v953, 0.0
  %v955 = vsel %vm690, %v952, 0.0
  %v956 = vsel %vm691, %v951, 0.0
  %v957 = vsel %vm692, %v950, 0.0
  %v958 = vpack.c.bf16 %v955, %v954
  %v959 = vpack.c.bf16 %v957, %v956
  %v960 = vld [vmem:[%s5] sm:$0xf]
  %v961 = vld [vmem:[%s5 + $0x4] sm:$0xf]
  %v962 = vld [vmem:[%s5 + $0x8] sm:$0xf]
  %v963 = vld [vmem:[%s5 + $0xc] sm:$0xf]
  %v964 = vrot.slane %v942, 6
  %v965 = vrot.slane %v943, 6
  %v966 = vrot.slane %v944, 6
  %v967 = vrot.slane %v945, 6
  %v968 = vsel %vm96, %v966, %v967
  %v969 = vsel %vm96, %v965, %v966
  %v970 = vsel %vm96, %v964, %v965
  %v971 = vsel %vm96, %v967, %v964
  %v972 = vsel %vm109, %v971, 0.0
  %v973 = vsel %vm110, %v970, 0.0
  %v974 = vsel %vm111, %v969, 0.0
  %v975 = vsel %vm112, %v968, 0.0
  %v976 = vpack.c.bf16 %v973, %v972
  %v977 = vpack.c.bf16 %v975, %v974
  %s978 = scalar_lea.vmem %s5, 16
  %v979 = vld [vmem:[%s978] sm:$0xf]
  %v980 = vld [vmem:[%s978 + $0x4] sm:$0xf]
  %v981 = vld [vmem:[%s978 + $0x8] sm:$0xf]
  %v982 = vld [vmem:[%s978 + $0xc] sm:$0xf]
  %v987 = vunpack.c.l.b16 %v979
  %v988 = vunpack.c.l.b16 %v980
  %v989 = vunpack.c.l.b16 %v981
  %v990 = vunpack.c.l.b16 %v982
  %v991 = vpack.c.b16 %v988, %v987
  %v992 = vpack.c.b16 %v990, %v989
  %v996 = vsel %vm394, %v976, 0
  %v999 = vsel %vm394, %v977, 0
  %1001 = vmatprep.subr.bf16.mxu0 0
  %1002 = vmatpush1.bf16.msra.mxu0 %v991
  %1003 = vmatprep.subr.bf16.mxu0 0
  %1004 = vmatpush1.bf16.msra.mxu0 %v992
  %1005 = vmatprep.subr.bf16.mxu0 0
  %1006 = vmatpush1.bf16.msra.mxu0 0
  %1007 = vmatprep.subr.bf16.mxu0 0
  %1008 = vmatpush1.bf16.msra.mxu0 0
  %1009 = vmatprep.subr.bf16.mxu0 0
  %1010 = vmatpush1.bf16.msra.mxu0 0
  %1011 = vmatprep.subr.bf16.mxu0 0
  %1012 = vmatpush1.bf16.msra.mxu0 0
  %1013 = vmatprep.subr.bf16.mxu0 0
  %1014 = vmatpush1.bf16.msra.mxu0 0
  %1015 = vmatprep.subr.bf16.mxu0 0
  %1016 = vmatpush1.bf16.msra.mxu0 0
  %1017 = vmatprep.subr.bf16.mxu0 0
  %1018 = vmatpush1.bf16.msra.mxu0 0
  %1019 = vmatprep.subr.bf16.mxu0 0
  %1020 = vmatpush1.bf16.msra.mxu0 0
  %1021 = vmatprep.subr.bf16.mxu0 0
  %1022 = vmatpush1.bf16.msra.mxu0 0
  %1023 = vmatprep.subr.bf16.mxu0 0
  %1024 = vmatpush1.bf16.msra.mxu0 0
  %1025 = vmatprep.subr.bf16.mxu0 0
  %1026 = vmatpush1.bf16.msra.mxu0 0
  %1027 = vmatprep.subr.bf16.mxu0 0
  %1028 = vmatpush1.bf16.msra.mxu0 0
  %1029 = vmatprep.subr.bf16.mxu0 0
  %1030 = vmatpush1.bf16.msra.mxu0 0
  %1031 = vmatprep.subr.bf16.mxu0 0
  %1032 = vmatpush1.bf16.msra.mxu0 0
  %1033 = vmatprep.mubr.bf16.mxu0 0
  %1034 = vmatmul.mubr.bf16.gmra.mrb[0].mxu0 %v996
  %v1035 = vpop.f32.mrb[0].mxu0
  %v1036 = vadd.f32 0.0, %v1035
  %v1037 = vpop.f32.mrb[0].mxu0
  %v1038 = vpop.f32.mrb[0].mxu0
  %v1039 = vadd.f32 0.0, %v1038
  %v1040 = vpop.f32.mrb[0].mxu0
  %1041 = vmatprep.mubr.bf16.mxu0 0
  %1042 = vmatmul.mubr.bf16.gmra.mrb[0].mxu0 %v999
  %v1043 = vpop.f32.mrb[0].mxu0
  %v1044 = vadd.f32 0.0, %v1043
  %v1045 = vpop.f32.mrb[0].mxu0
  %v1046 = vpop.f32.mrb[0].mxu0
  %v1047 = vadd.f32 0.0, %v1046
  %v1048 = vpop.f32.mrb[0].mxu0
  %1049 = vdwg.mxu0
  %v1054 = vunpack.c.l.b16 %v960
  %v1055 = vunpack.c.l.b16 %v961
  %v1056 = vunpack.c.l.b16 %v962
  %v1057 = vunpack.c.l.b16 %v963
  %v1058 = vpack.c.b16 %v1055, %v1054
  %v1059 = vpack.c.b16 %v1057, %v1056
  %v1063 = vsel %vm394, %v958, 0
  %v1066 = vsel %vm394, %v959, 0
  %1068 = vmatprep.subr.bf16.mxu0 0
  %1069 = vmatpush1.bf16.msra.mxu0 %v1058
  %1070 = vmatprep.subr.bf16.mxu0 0
  %1071 = vmatpush1.bf16.msra.mxu0 %v1059
  %1072 = vmatprep.subr.bf16.mxu0 0
  %1073 = vmatpush1.bf16.msra.mxu0 0
  %1074 = vmatprep.subr.bf16.mxu0 0
  %1075 = vmatpush1.bf16.msra.mxu0 0
  %1076 = vmatprep.subr.bf16.mxu0 0
  %1077 = vmatpush1.bf16.msra.mxu0 0
  %1078 = vmatprep.subr.bf16.mxu0 0
  %1079 = vmatpush1.bf16.msra.mxu0 0
  %1080 = vmatprep.subr.bf16.mxu0 0
  %1081 = vmatpush1.bf16.msra.mxu0 0
  %1082 = vmatprep.subr.bf16.mxu0 0
  %1083 = vmatpush1.bf16.msra.mxu0 0
  %1084 = vmatprep.subr.bf16.mxu0 0
  %1085 = vmatpush1.bf16.msra.mxu0 0
  %1086 = vmatprep.subr.bf16.mxu0 0
  %1087 = vmatpush1.bf16.msra.mxu0 0
  %1088 = vmatprep.subr.bf16.mxu0 0
  %1089 = vmatpush1.bf16.msra.mxu0 0
  %1090 = vmatprep.subr.bf16.mxu0 0
  %1091 = vmatpush1.bf16.msra.mxu0 0
  %1092 = vmatprep.subr.bf16.mxu0 0
  %1093 = vmatpush1.bf16.msra.mxu0 0
  %1094 = vmatprep.subr.bf16.mxu0 0
  %1095 = vmatpush1.bf16.msra.mxu0 0
  %1096 = vmatprep.subr.bf16.mxu0 0
  %1097 = vmatpush1.bf16.msra.mxu0 0
  %1098 = vmatprep.subr.bf16.mxu0 0
  %1099 = vmatpush1.bf16.msra.mxu0 0
  %1100 = vmatprep.mubr.bf16.mxu0 0
  %1101 = vmatmul.mubr.bf16.gmra.mrb[0].mxu0 %v1063
  %v1102 = vpop.f32.mrb[0].mxu0
  %v1103 = vadd.f32 %v1036, %v1102
  %v1104 = vpop.f32.mrb[0].mxu0
  %v1105 = vpop.f32.mrb[0].mxu0
  %v1106 = vadd.f32 %v1039, %v1105
  %v1107 = vpop.f32.mrb[0].mxu0
  %1108 = vmatprep.mubr.bf16.mxu0 0
  %1109 = vmatmul.mubr.bf16.gmra.mrb[0].mxu0 %v1066
  %v1110 = vpop.f32.mrb[0].mxu0
  %v1111 = vadd.f32 %v1044, %v1110
  %v1112 = vpop.f32.mrb[0].mxu0
  %v1113 = vpop.f32.mrb[0].mxu0
  %v1114 = vadd.f32 %v1047, %v1113
  %v1115 = vpop.f32.mrb[0].mxu0
  %1116 = vdwg.mxu0
  %v1117 = vpack.c.bf16 %v943, %v942
  %v1118 = vpack.c.bf16 %v945, %v944
  %s1119 = scalar_lea.vmem %s5, 32
  %v1120 = vld [vmem:[%s1119] sm:$0xf]
  %v1121 = vld [vmem:[%s1119 + $0x4] sm:$0xf]
  %v1122 = vld [vmem:[%s1119 + $0x8] sm:$0xf]
  %v1123 = vld [vmem:[%s1119 + $0xc] sm:$0xf]
  %v1128 = vunpack.c.l.b16 %v1120
  %v1129 = vunpack.c.l.b16 %v1121
  %v1130 = vunpack.c.l.b16 %v1122
  %v1131 = vunpack.c.l.b16 %v1123
  %v1132 = vpack.c.b16 %v1129, %v1128
  %v1133 = vpack.c.b16 %v1131, %v1130
  %v1137 = vsel %vm394, %v1117, 0
  %v1140 = vsel %vm394, %v1118, 0
  %1142 = vmatprep.subr.bf16.mxu0 0
  %1143 = vmatpush1.bf16.msra.mxu0 %v1132
  %1144 = vmatprep.subr.bf16.mxu0 0
  %1145 = vmatpush1.bf16.msra.mxu0 %v1133
  %1146 = vmatprep.subr.bf16.mxu0 0
  %1147 = vmatpush1.bf16.msra.mxu0 0
  %1148 = vmatprep.subr.bf16.mxu0 0
  %1149 = vmatpush1.bf16.msra.mxu0 0
  %1150 = vmatprep.subr.bf16.mxu0 0
  %1151 = vmatpush1.bf16.msra.mxu0 0
  %1152 = vmatprep.subr.bf16.mxu0 0
  %1153 = vmatpush1.bf16.msra.mxu0 0
  %1154 = vmatprep.subr.bf16.mxu0 0
  %1155 = vmatpush1.bf16.msra.mxu0 0
  %1156 = vmatprep.subr.bf16.mxu0 0
  %1157 = vmatpush1.bf16.msra.mxu0 0
  %1158 = vmatprep.subr.bf16.mxu0 0
  %1159 = vmatpush1.bf16.msra.mxu0 0
  %1160 = vmatprep.subr.bf16.mxu0 0
  %1161 = vmatpush1.bf16.msra.mxu0 0
  %1162 = vmatprep.subr.bf16.mxu0 0
  %1163 = vmatpush1.bf16.msra.mxu0 0
  %1164 = vmatprep.subr.bf16.mxu0 0
  %1165 = vmatpush1.bf16.msra.mxu0 0
  %1166 = vmatprep.subr.bf16.mxu0 0
  %1167 = vmatpush1.bf16.msra.mxu0 0
  %1168 = vmatprep.subr.bf16.mxu0 0
  %1169 = vmatpush1.bf16.msra.mxu0 0
  %1170 = vmatprep.subr.bf16.mxu0 0
  %1171 = vmatpush1.bf16.msra.mxu0 0
  %1172 = vmatprep.subr.bf16.mxu0 0
  %1173 = vmatpush1.bf16.msra.mxu0 0
  %1174 = vmatprep.mubr.bf16.mxu0 0
  %1175 = vmatmul.mubr.bf16.gmra.mrb[0].mxu0 %v1137
  %v1176 = vpop.f32.mrb[0].mxu0
  %v1177 = vadd.f32 0.0, %v1176
  %v1178 = vpop.f32.mrb[0].mxu0
  %v1179 = vpop.f32.mrb[0].mxu0
  %v1180 = vadd.f32 0.0, %v1179
  %v1181 = vpop.f32.mrb[0].mxu0
  %1182 = vmatprep.mubr.bf16.mxu0 0
  %1183 = vmatmul.mubr.bf16.gmra.mrb[0].mxu0 %v1140
  %v1184 = vpop.f32.mrb[0].mxu0
  %v1185 = vadd.f32 0.0, %v1184
  %v1186 = vpop.f32.mrb[0].mxu0
  %v1187 = vpop.f32.mrb[0].mxu0
  %v1188 = vadd.f32 0.0, %v1187
  %v1189 = vpop.f32.mrb[0].mxu0
  %1190 = vdwg.mxu0
  %v1191 = vadd.f32 %v1103, %v1177
  %v1192 = vadd.f32 %v1106, %v1180
  %v1193 = vadd.f32 %v1111, %v1185
  %v1194 = vadd.f32 %v1114, %v1188
  %v1195 = vlaneseq
  %v1196 = vshrl.u32 %v1195, 7
  %v1197 = vsub.s32 4, %v1196
  %v1198 = vrot.slane %v87, %v1197
  %v1199 = vadd.f32 %v1191, %v1198
  %v1200 = vadd.f32 %v1192, %v1198
  %v1201 = vadd.f32 %v1193, %v1198
  %v1202 = vadd.f32 %v1194, %v1198
  %v1203 = vmax.f32 %v1199, 0.0
  %v1204 = vmax.f32 %v1200, 0.0
  %v1205 = vmax.f32 %v1201, 0.0
  %v1206 = vmax.f32 %v1202, 0.0
  %v1207 = vadd.f32 %v1203, %v668
  %v1208 = vadd.f32 %v1204, %v669
  %v1209 = vadd.f32 %v1205, %v670
  %v1210 = vadd.f32 %v1206, %v671
  %v1211 = vmax.f32 %v1207, 0.0
  %v1212 = vmax.f32 %v1208, 0.0
  %v1213 = vmax.f32 %v1209, 0.0
  %v1214 = vmax.f32 %v1210, 0.0
  %v1215 = vld [vmem:[%s7] sm:$0x1]
  %s1216 = sld [smem:[#allocation2]]
  %v1217 = vstv %s1216
  %v1219 = vsel %vm394, %v1215, 0
  %v1222 = vsel %vm394, %v1211, 0
  %v1225 = vsel %vm394, %v1212, 0
  %v1228 = vsel %vm394, %v1213, 0
  %v1231 = vsel %vm394, %v1214, 0
  %1233 = vmatprep.subr.mxu0 0.0
  %1234 = vmatpush1.xpose.msra.mxu0 %v1222
  %1235 = vmatprep.subr.mxu0 0.0
  %1236 = vmatpush1.xpose.msra.mxu0 %v1225
  %1237 = vmatprep.subr.mxu0 0.0
  %1238 = vmatpush1.xpose.msra.mxu0 %v1228
  %1239 = vmatprep.subr.mxu0 0.0
  %1240 = vmatpush1.xpose.msra.mxu0 %v1231
  %1241 = vmatprep.subr.mxu0 0.0
  %1242 = vmatpush1.xpose.msra.mxu0 0.0
  %1243 = vmatprep.subr.mxu0 0.0
  %1244 = vmatpush1.xpose.msra.mxu0 0.0
  %1245 = vmatprep.subr.mxu0 0.0
  %1246 = vmatpush1.xpose.msra.mxu0 0.0
  %1247 = vmatprep.subr.mxu0 0.0
  %1248 = vmatpush1.xpose.msra.mxu0 0.0
  %1249 = vmatprep.subr.mxu0 0.0
  %1250 = vmatpush1.xpose.msra.mxu0 0.0
  %1251 = vmatprep.subr.mxu0 0.0
  %1252 = vmatpush1.xpose.msra.mxu0 0.0
  %1253 = vmatprep.subr.mxu0 0.0
  %1254 = vmatpush1.xpose.msra.mxu0 0.0
  %1255 = vmatprep.subr.mxu0 0.0
  %1256 = vmatpush1.xpose.msra.mxu0 0.0
  %1257 = vmatprep.subr.mxu0 0.0
  %1258 = vmatpush1.xpose.msra.mxu0 0.0
  %1259 = vmatprep.subr.mxu0 0.0
  %1260 = vmatpush1.xpose.msra.mxu0 0.0
  %1261 = vmatprep.subr.mxu0 0.0
  %1262 = vmatpush1.xpose.msra.mxu0 0.0
  %1263 = vmatprep.subr.mxu0 0.0
  %1264 = vmatpush1.xpose.msra.mxu0 0.0
  %1265 = vmatprep.subr.mxu0 0.0
  %1266 = vmatpush1.xpose.msra.mxu0 0.0
  %1267 = vmatprep.subr.mxu0 0.0
  %1268 = vmatpush1.xpose.msra.mxu0 0.0
  %1269 = vmatprep.subr.mxu0 0.0
  %1270 = vmatpush1.xpose.msra.mxu0 0.0
  %1271 = vmatprep.subr.mxu0 0.0
  %1272 = vmatpush1.xpose.msra.mxu0 0.0
  %1273 = vmatprep.subr.mxu0 0.0
  %1274 = vmatpush1.xpose.msra.mxu0 0.0
  %1275 = vmatprep.subr.mxu0 0.0
  %1276 = vmatpush1.xpose.msra.mxu0 0.0
  %1277 = vmatprep.subr.mxu0 0.0
  %1278 = vmatpush1.xpose.msra.mxu0 0.0
  %1279 = vmatprep.subr.mxu0 0.0
  %1280 = vmatpush1.xpose.msra.mxu0 0.0
  %1281 = vmatprep.subr.mxu0 0.0
  %1282 = vmatpush1.xpose.msra.mxu0 0.0
  %1283 = vmatprep.subr.mxu0 0.0
  %1284 = vmatpush1.xpose.msra.mxu0 0.0
  %1285 = vmatprep.subr.mxu0 0.0
  %1286 = vmatpush1.xpose.msra.mxu0 0.0
  %1287 = vmatprep.subr.mxu0 0.0
  %1288 = vmatpush1.xpose.msra.mxu0 0.0
  %1289 = vmatprep.subr.mxu0 0.0
  %1290 = vmatpush1.xpose.msra.mxu0 0.0
  %1291 = vmatprep.subr.mxu0 0.0
  %1292 = vmatpush1.xpose.msra.mxu0 0.0
  %1293 = vmatprep.subr.mxu0 0.0
  %1294 = vmatpush1.xpose.msra.mxu0 0.0
  %1295 = vmatprep.subr.mxu0 0.0
  %1296 = vmatpush1.xpose.msra.mxu0 0.0
  %1297 = vmatprep.mubr.f32.mxu0 0.0
  %1298 = vmatmul.mubr.f32.gmra.mrb[0].mxu0 %v1219
  %v1299 = vpop.f32.mrb[0].mxu0
  %v1300 = vadd.f32 %v1217, %v1299
  %v1301 = vpop.f32.mrb[0].mxu0
  %1302 = vdwg.mxu0
  %v1303 = vsub.f32 0.0, %v1300
  %v1304 = vmul.f32 %v1303, 1.442695
  %v1305 = vpow.pop %v1304
  %v1306 = vadd.f32 %v1305, 1.0
  %v1307 = vrcp.pop %v1306
  %v1308 = vmin.f32 %v1307, 1.0
  %vm1309 = vcmask 253952
  %1310 = vst.msk [vmem:[%s9] sm:$0x1] %vm1309, %v1308
  // Predicated region
  $region38: #{discriminator_forward.1} parent=0 // pred_check
    _
  $region39: #{discriminator_forward.1} parent=0 // pred_check_branch
    %1312 = sbr.rel (0) target = $region41
  $region40: #{discriminator_forward.1} parent=0 // pred_region
    _
  $region41: #{discriminator_forward.1} parent=0 // pred_fallthru
    _
  // Predicated region
  $region42: #{discriminator_forward.1} parent=0 // pred_check
    _
  $region43: #{discriminator_forward.1} parent=0 // pred_check_branch
    %1314 = sbr.rel (0) target = $region45
  $region44: #{discriminator_forward.1} parent=0 // pred_region
    _
  $region45: #{discriminator_forward.1} parent=0 // pred_fallthru
    _

</llo_original>
